<compile_context>
chip_gen: v5e
topology: v5e:2x2
jax: 0.10.0
libtpu: 0.0.40
codegen_flags: <defaults>
</compile_context>

<pallas_src>
import functools

import jax
import jax.numpy as jnp
from jax.experimental import pallas as pl
from jax.experimental.pallas import tpu as pltpu


def link_predictor_kernel(xi_ref, xj_ref, w1_ref, b1_ref, w2_ref, b2_ref,
                          w3_ref, b3_ref, o_ref):
    # element-wise product of the two node embeddings (f32, lane-aligned VPU)
    x = xi_ref[...] * xj_ref[...]                                # (tile_p, P*Cin)

    # hidden layer 1: Linear -> ReLU   (dropout == identity in eval mode)
    h = jnp.dot(x.astype(jnp.bfloat16), w1_ref[...],
                preferred_element_type=jnp.float32) + b1_ref[...]
    h = jnp.maximum(h, 0.0)

    # hidden layer 2: Linear -> ReLU
    h = jnp.dot(h.astype(jnp.bfloat16), w2_ref[...],
                preferred_element_type=jnp.float32) + b2_ref[...]
    h = jnp.maximum(h, 0.0)

    # output layer (block-diagonal packed): (tile_p, P*H) @ (P*H, P*Cout)
    z = jnp.dot(h.astype(jnp.bfloat16), w3_ref[...],
                preferred_element_type=jnp.float32) + b3_ref[...]
    o_ref[...] = jax.nn.sigmoid(z)

    # TODO(synk): F.dropout with training=True (stochastic masking) is not
    # implemented; kernel reproduces eval-mode semantics (dropout = identity).


def _round_up(x, m):
    return (x + m - 1) // m * m


def _block_diag(w, p):
    """(a, b) -> (p*a, p*b): p copies of w on the diagonal."""
    return jnp.kron(jnp.eye(p, dtype=w.dtype), w)


def link_predictor(x_i, x_j, params, *, tile_rows=2048):
    """params = (w1, b1, w2, b2, w3, b3) with w_k [in_k, out_k], b_k [1, out_k]."""
    w1, b1, w2, b2, w3, b3 = params
    N, Cin = x_i.shape
    H = w1.shape[1]
    Cout = w3.shape[1]

    # Pack P batch rows per 128-lane vreg when the feature width divides 128.
    P = 128 // Cin if (Cin <= 128 and 128 % Cin == 0) else 1

    # Minimal pad so N is a multiple of P (no-op in the common case).
    pad = (-N) % P
    if pad:
        x_i = jnp.pad(x_i, ((0, pad), (0, 0)))
        x_j = jnp.pad(x_j, ((0, pad), (0, 0)))
    n_rows = N + pad
    n_p = n_rows // P

    # Free row-major reshape: (n_rows, Cin) -> (n_p, P*Cin).  No HBM pass.
    xi_p = x_i.reshape(n_p, P * Cin)
    xj_p = x_j.reshape(n_p, P * Cin)

    # Batch tile in packed rows; single big tile when n_p fits (grid = cdiv,
    # partial last block masked by Pallas -- no batch padding needed).
    tile_p = max(8, min(_round_up(tile_rows // P, 8), _round_up(n_p, 8)))
    grid = pl.cdiv(n_p, tile_p)

    # Block-diagonal bf16 MXU weights (f32 accumulation in-kernel), f32 biases.
    w1b = _block_diag(w1, P).astype(jnp.bfloat16)                 # (P*Cin, P*H)
    w2b = _block_diag(w2, P).astype(jnp.bfloat16)                 # (P*H,  P*H)
    w3b = _block_diag(w3, P).astype(jnp.bfloat16)                 # (P*H,  P*Cout)
    b1r = jnp.tile(jnp.reshape(b1, (1, H)), (1, P)).astype(jnp.float32)
    b2r = jnp.tile(jnp.reshape(b2, (1, H)), (1, P)).astype(jnp.float32)
    b3r = jnp.tile(jnp.reshape(b3, (1, Cout)), (1, P)).astype(jnp.float32)

    def resident(a):   # fetched once, stays resident in VMEM across the grid
        return pl.BlockSpec(a.shape, lambda i: (0, 0))

    out_p = pl.pallas_call(
        link_predictor_kernel,
        out_shape=jax.ShapeDtypeStruct((n_p, P * Cout), jnp.float32),
        grid_spec=pltpu.PrefetchScalarGridSpec(
            num_scalar_prefetch=0,
            grid=(grid,),
            in_specs=[
                pl.BlockSpec((tile_p, P * Cin), lambda i: (i, 0)),   # x_i packed
                pl.BlockSpec((tile_p, P * Cin), lambda i: (i, 0)),   # x_j packed
                resident(w1b), resident(b1r),
                resident(w2b), resident(b2r),
                resident(w3b), resident(b3r),
            ],
            out_specs=pl.BlockSpec((tile_p, P * Cout), lambda i: (i, 0)),
        ),
        compiler_params=pltpu.CompilerParams(
            dimension_semantics=("parallel",)),
    )(xi_p, xj_p, w1b, b1r, w2b, b2r, w3b, b3r)

    # (n_p, P*Cout) -> (n_rows, Cout) is a free row-major reshape; drop pad rows.
    return out_p.reshape(n_rows, Cout)[:N]


def init_linear(key, fan_in, fan_out):
    """PyTorch-style Linear init: U(-1/sqrt(fan_in), 1/sqrt(fan_in)).
    Returns W as [fan_in, fan_out] (pre-transposed) and b as [1, fan_out]."""
    kw, kb = jax.random.split(key)
    bound = 1.0 / jnp.sqrt(fan_in)
    w = jax.random.uniform(kw, (fan_in, fan_out), jnp.float32, -bound, bound)
    b = jax.random.uniform(kb, (1, fan_out), jnp.float32, -bound, bound)
    return w, b


if __name__ == "__main__":
    # LinkPredictor(in_channels=32, hidden_channels=32, out_channels=1,
    #               num_layers=3, dropout=0.5) in eval mode.
    in_channels, hidden_channels, out_channels = 32, 32, 1
    N = 2000  # candidate links; not a multiple of the tile -> exercises masking

    key = jax.random.PRNGKey(0)
    k_xi, k_xj, k1, k2, k3 = jax.random.split(key, 5)

    x_i = jax.random.normal(k_xi, (N, in_channels), jnp.float32)
    x_j = jax.random.normal(k_xj, (N, in_channels), jnp.float32)

    w1, b1 = init_linear(k1, in_channels, hidden_channels)
    w2, b2 = init_linear(k2, hidden_channels, hidden_channels)
    w3, b3 = init_linear(k3, hidden_channels, out_channels)
    params = (w1, b1, w2, b2, w3, b3)

    fwd = jax.jit(functools.partial(link_predictor, tile_rows=2048))
    out = jax.block_until_ready(fwd(x_i, x_j, params))

    # Reference in plain JAX (f32); kernel rounds MXU operands to bf16 with
    # f32 accumulation, so compare with a loosened tolerance.
    x = x_i * x_j
    h = jnp.maximum(x @ w1 + b1, 0.0)
    h = jnp.maximum(h @ w2 + b2, 0.0)
    ref = jax.nn.sigmoid(h @ w3 + b3)
    assert out.shape == (N, out_channels)
    err = float(jnp.max(jnp.abs(out - ref)))
    assert jnp.allclose(out, ref, atol=1e-2, rtol=0.0), err

    print("KERNEL_OK")
</pallas_src>

<mosaic_0001>
module attributes {stable_mosaic.version = 11 : i64} {
  func.func @link_predictor_kernel(%arg0: i32, %arg1: memref<504x128xf32, #tpu.memory_space<vmem>>, %arg2: memref<504x128xf32, #tpu.memory_space<vmem>>, %arg3: memref<128x128xbf16, #tpu.memory_space<vmem>>, %arg4: memref<1x128xf32, #tpu.memory_space<vmem>>, %arg5: memref<128x128xbf16, #tpu.memory_space<vmem>>, %arg6: memref<1x128xf32, #tpu.memory_space<vmem>>, %arg7: memref<128x4xbf16, #tpu.memory_space<vmem>>, %arg8: memref<1x4xf32, #tpu.memory_space<vmem>>, %arg9: memref<504x4xf32, #tpu.memory_space<vmem>>) attributes {dimension_semantics = [#tpu.dimension_semantics<parallel>], iteration_bounds = array<i64: 1>, scalar_prefetch = 0 : i64, scratch_operands = 0 : i64, tpu.core_type = #tpu.core_type<tc>, window_params = [{transform_indices = @transform_0, window_bounds = array<i64: 504, 128>}, {transform_indices = @transform_1, window_bounds = array<i64: 504, 128>}, {pipeline_mode = #tpu.pipeline_mode<synchronous>, transform_indices = @transform_2, window_bounds = array<i64: 128, 128>}, {pipeline_mode = #tpu.pipeline_mode<synchronous>, transform_indices = @transform_3, window_bounds = array<i64: 1, 128>}, {pipeline_mode = #tpu.pipeline_mode<synchronous>, transform_indices = @transform_4, window_bounds = array<i64: 128, 128>}, {pipeline_mode = #tpu.pipeline_mode<synchronous>, transform_indices = @transform_5, window_bounds = array<i64: 1, 128>}, {pipeline_mode = #tpu.pipeline_mode<synchronous>, transform_indices = @transform_6, window_bounds = array<i64: 128, 4>}, {pipeline_mode = #tpu.pipeline_mode<synchronous>, transform_indices = @transform_7, window_bounds = array<i64: 1, 4>}, {transform_indices = @transform_8, window_bounds = array<i64: 504, 4>}]} {
    %c0 = arith.constant 0 : index
    %c0_0 = arith.constant 0 : index
    %0 = vector.load %arg1[%c0, %c0_0] : memref<504x128xf32, #tpu.memory_space<vmem>>, vector<504x128xf32>
    %c0_1 = arith.constant 0 : index
    %c0_2 = arith.constant 0 : index
    %1 = vector.load %arg2[%c0_1, %c0_2] : memref<504x128xf32, #tpu.memory_space<vmem>>, vector<504x128xf32>
    %2 = arith.mulf %0, %1 : vector<504x128xf32>
    %3 = arith.truncf %2 : vector<504x128xf32> to vector<504x128xbf16>
    %c0_3 = arith.constant 0 : index
    %c0_4 = arith.constant 0 : index
    %4 = vector.load %arg3[%c0_3, %c0_4] : memref<128x128xbf16, #tpu.memory_space<vmem>>, vector<128x128xbf16>
    %cst = arith.constant dense<0.000000e+00> : vector<504x128xf32>
    %5 = tpu.matmul %3, %4, %cst {dimension_numbers = #tpu.dot_dimension_numbers<[1], [0], [0], [1], [0, 0, 1, 1], [], []>} : vector<504x128xbf16>, vector<128x128xbf16>, vector<504x128xf32> -> vector<504x128xf32>
    %c0_5 = arith.constant 0 : index
    %c0_6 = arith.constant 0 : index
    %6 = vector.load %arg4[%c0_5, %c0_6] : memref<1x128xf32, #tpu.memory_space<vmem>>, vector<1x128xf32>
    %7 = vector.broadcast %6 : vector<1x128xf32> to vector<504x128xf32>
    %8 = arith.addf %5, %7 : vector<504x128xf32>
    %cst_7 = arith.constant 0.000000e+00 : f32
    %9 = vector.broadcast %cst_7 : f32 to vector<504x128xf32>
    %10 = arith.maximumf %8, %9 : vector<504x128xf32>
    %11 = arith.truncf %10 : vector<504x128xf32> to vector<504x128xbf16>
    %c0_8 = arith.constant 0 : index
    %c0_9 = arith.constant 0 : index
    %12 = vector.load %arg5[%c0_8, %c0_9] : memref<128x128xbf16, #tpu.memory_space<vmem>>, vector<128x128xbf16>
    %cst_10 = arith.constant dense<0.000000e+00> : vector<504x128xf32>
    %13 = tpu.matmul %11, %12, %cst_10 {dimension_numbers = #tpu.dot_dimension_numbers<[1], [0], [0], [1], [0, 0, 1, 1], [], []>} : vector<504x128xbf16>, vector<128x128xbf16>, vector<504x128xf32> -> vector<504x128xf32>
    %c0_11 = arith.constant 0 : index
    %c0_12 = arith.constant 0 : index
    %14 = vector.load %arg6[%c0_11, %c0_12] : memref<1x128xf32, #tpu.memory_space<vmem>>, vector<1x128xf32>
    %15 = vector.broadcast %14 : vector<1x128xf32> to vector<504x128xf32>
    %16 = arith.addf %13, %15 : vector<504x128xf32>
    %cst_13 = arith.constant 0.000000e+00 : f32
    %17 = vector.broadcast %cst_13 : f32 to vector<504x128xf32>
    %18 = arith.maximumf %16, %17 : vector<504x128xf32>
    %19 = arith.truncf %18 : vector<504x128xf32> to vector<504x128xbf16>
    %c0_14 = arith.constant 0 : index
    %c0_15 = arith.constant 0 : index
    %20 = vector.load %arg7[%c0_14, %c0_15] : memref<128x4xbf16, #tpu.memory_space<vmem>>, vector<128x4xbf16>
    %cst_16 = arith.constant dense<0.000000e+00> : vector<504x4xf32>
    %21 = tpu.matmul %19, %20, %cst_16 {dimension_numbers = #tpu.dot_dimension_numbers<[1], [0], [0], [1], [0, 0, 1, 1], [], []>} : vector<504x128xbf16>, vector<128x4xbf16>, vector<504x4xf32> -> vector<504x4xf32>
    %c0_17 = arith.constant 0 : index
    %c0_18 = arith.constant 0 : index
    %22 = vector.load %arg8[%c0_17, %c0_18] : memref<1x4xf32, #tpu.memory_space<vmem>>, vector<1x4xf32>
    %23 = vector.broadcast %22 : vector<1x4xf32> to vector<504x4xf32>
    %24 = arith.addf %21, %23 : vector<504x4xf32>
    %25 = arith.negf %24 : vector<504x4xf32>
    %26 = math.exp %25 : vector<504x4xf32>
    %cst_19 = arith.constant 1.000000e+00 : f32
    %27 = vector.broadcast %cst_19 : f32 to vector<504x4xf32>
    %28 = arith.addf %27, %26 : vector<504x4xf32>
    %29 = arith.divf %27, %28 : vector<504x4xf32>
    %c0_20 = arith.constant 0 : index
    %c0_21 = arith.constant 0 : index
    %30 = vector.load %arg9[%c0_20, %c0_21] : memref<504x4xf32, #tpu.memory_space<vmem>>, vector<504x4xf32>
    tpu.vector_store %arg9[%c0_20, %c0_21], %29 {strides = array<i32>} : memref<504x4xf32, #tpu.memory_space<vmem>>, vector<504x4xf32>,
    return
  }
  func.func @transform_0(%arg0: i32) -> (i32, i32) {
    %c0_i32 = arith.constant 0 : i32
    %c0_i32_0 = arith.constant 0 : i32
    return %arg0, %c0_i32 : i32, i32
  }
  func.func @transform_1(%arg0: i32) -> (i32, i32) {
    %c0_i32 = arith.constant 0 : i32
    %c0_i32_0 = arith.constant 0 : i32
    return %arg0, %c0_i32 : i32, i32
  }
  func.func @transform_2(%arg0: i32) -> (i32, i32) {
    %c0_i32 = arith.constant 0 : i32
    %c0_i32_0 = arith.constant 0 : i32
    %c0_i32_1 = arith.constant 0 : i32
    return %c0_i32, %c0_i32_0 : i32, i32
  }
  func.func @transform_3(%arg0: i32) -> (i32, i32) {
    %c0_i32 = arith.constant 0 : i32
    %c0_i32_0 = arith.constant 0 : i32
    %c0_i32_1 = arith.constant 0 : i32
    return %c0_i32, %c0_i32_0 : i32, i32
  }
  func.func @transform_4(%arg0: i32) -> (i32, i32) {
    %c0_i32 = arith.constant 0 : i32
    %c0_i32_0 = arith.constant 0 : i32
    %c0_i32_1 = arith.constant 0 : i32
    return %c0_i32, %c0_i32_0 : i32, i32
  }
  func.func @transform_5(%arg0: i32) -> (i32, i32) {
    %c0_i32 = arith.constant 0 : i32
    %c0_i32_0 = arith.constant 0 : i32
    %c0_i32_1 = arith.constant 0 : i32
    return %c0_i32, %c0_i32_0 : i32, i32
  }
  func.func @transform_6(%arg0: i32) -> (i32, i32) {
    %c0_i32 = arith.constant 0 : i32
    %c0_i32_0 = arith.constant 0 : i32
    %c0_i32_1 = arith.constant 0 : i32
    return %c0_i32, %c0_i32_0 : i32, i32
  }
  func.func @transform_7(%arg0: i32) -> (i32, i32) {
    %c0_i32 = arith.constant 0 : i32
    %c0_i32_0 = arith.constant 0 : i32
    %c0_i32_1 = arith.constant 0 : i32
    return %c0_i32, %c0_i32_0 : i32, i32
  }
  func.func @transform_8(%arg0: i32) -> (i32, i32) {
    %c0_i32 = arith.constant 0 : i32
    %c0_i32_0 = arith.constant 0 : i32
    return %arg0, %c0_i32 : i32, i32
  }
}

</mosaic_0001>

<llo_original>
// kernel: link_predictor.1
$region0: #{link_predictor.1}
  #allocation0 [shape = 'u32[]', space=smem, size = 0x4, offset = 0x4, fixed_abs, tag = 'smem constant byte address 0x4 - core index']
  #allocation1 [shape = 'u32[72,128]{1,0:T(1,128)}', space=vmem, size = 0x9000, scoped, tag = 'internal scratch']
  %s0 = inlined_call_operand.vmem [shape: f32[500,128], index: 0, kind: input, shape index: {}]
  %s1 = inlined_call_operand.vmem [shape: f32[500,128], index: 1, kind: input, shape index: {}]
  %s2 = inlined_call_operand.vmem [shape: bf16[128,128], index: 2, kind: input, shape index: {}]
  %s3 = inlined_call_operand.vmem [shape: f32[1,128], index: 3, kind: input, shape index: {}]
  %s4 = inlined_call_operand.vmem [shape: bf16[128,128], index: 4, kind: input, shape index: {}]
  %s5 = inlined_call_operand.vmem [shape: f32[1,128], index: 5, kind: input, shape index: {}]
  %s6 = inlined_call_operand.vmem [shape: bf16[128,4], index: 6, kind: input, shape index: {}]
  %s7 = inlined_call_operand.vmem [shape: f32[1,4], index: 7, kind: input, shape index: {}]
  %s8 = inlined_call_operand.vmem [shape: f32[500,4], index: 8, kind: output, shape index: {}]
  %s9 = sld [smem:[#allocation0]]
  $region42: #{link_predictor.1} parent=0
    _
  %s11 = ssub.s32 1, %s9
  %s12 = scalar_select 0, %s11, %s9
  // Predicated region
  $region2: #{link_predictor.1} parent=0 // pred_check
    _
  $region3: #{link_predictor.1} parent=0 // pred_check_branch
    %14 = sbr.rel (0) target = $region5
  $region4: #{link_predictor.1} parent=0 // pred_region
    _
  $region5: #{link_predictor.1} parent=0 // pred_fallthru
    _
  // Predicated region
  $region6: #{link_predictor.1} parent=0 // pred_check
    _
  $region7: #{link_predictor.1} parent=0 // pred_check_branch
    %16 = sbr.rel (0) target = $region9
  $region8: #{link_predictor.1} parent=0 // pred_region
    _
  $region9: #{link_predictor.1} parent=0 // pred_fallthru
    _
  // Predicated region
  $region10: #{link_predictor.1} parent=0 // pred_check
    _
  $region11: #{link_predictor.1} parent=0 // pred_check_branch
    %18 = sbr.rel (0) target = $region13
  $region12: #{link_predictor.1} parent=0 // pred_region
    _
  $region13: #{link_predictor.1} parent=0 // pred_fallthru
    _
  // Predicated region
  $region14: #{link_predictor.1} parent=0 // pred_check
    _
  $region15: #{link_predictor.1} parent=0 // pred_check_branch
    %20 = sbr.rel (0) target = $region17
  $region16: #{link_predictor.1} parent=0 // pred_region
    _
  $region17: #{link_predictor.1} parent=0 // pred_fallthru
    _
  // Predicated region
  $region18: #{link_predictor.1} parent=0 // pred_check
    _
  $region19: #{link_predictor.1} parent=0 // pred_check_branch
    %22 = sbr.rel (0) target = $region21
  $region20: #{link_predictor.1} parent=0 // pred_region
    _
  $region21: #{link_predictor.1} parent=0 // pred_fallthru
    _
  // Predicated region
  $region22: #{link_predictor.1} parent=0 // pred_check
    _
  $region23: #{link_predictor.1} parent=0 // pred_check_branch
    %24 = sbr.rel (0) target = $region25
  $region24: #{link_predictor.1} parent=0 // pred_region
    _
  $region25: #{link_predictor.1} parent=0 // pred_fallthru
    _
  // Predicated region
  $region26: #{link_predictor.1} parent=0 // pred_check
    _
  $region27: #{link_predictor.1} parent=0 // pred_check_branch
    %26 = sbr.rel (0) target = $region29
  $region28: #{link_predictor.1} parent=0 // pred_region
    _
  $region29: #{link_predictor.1} parent=0 // pred_fallthru
    _
  // Predicated region
  $region30: #{link_predictor.1} parent=0 // pred_check
    _
  $region31: #{link_predictor.1} parent=0 // pred_check_branch
    %28 = sbr.rel (0) target = $region33
  $region32: #{link_predictor.1} parent=0 // pred_region
    _
  $region33: #{link_predictor.1} parent=0 // pred_fallthru
    _
  %v29 = vld [vmem:[%s0] sm:$0xff]
  %v30 = vld [vmem:[%s0 + $0x8] sm:$0xff]
  %v31 = vld [vmem:[%s0 + $0x10] sm:$0xff]
  %v32 = vld [vmem:[%s0 + $0x18] sm:$0xff]
  %v33 = vld [vmem:[%s0 + $0x20] sm:$0xff]
  %v34 = vld [vmem:[%s0 + $0x28] sm:$0xff]
  %v35 = vld [vmem:[%s0 + $0x30] sm:$0xff]
  %v36 = vld [vmem:[%s0 + $0x38] sm:$0xff]
  %v37 = vld [vmem:[%s0 + $0x40] sm:$0xff]
  %v38 = vld [vmem:[%s0 + $0x48] sm:$0xff]
  %v39 = vld [vmem:[%s0 + $0x50] sm:$0xff]
  %v40 = vld [vmem:[%s0 + $0x58] sm:$0xff]
  %v41 = vld [vmem:[%s0 + $0x60] sm:$0xff]
  %v42 = vld [vmem:[%s0 + $0x68] sm:$0xff]
  %v43 = vld [vmem:[%s0 + $0x70] sm:$0xff]
  %v44 = vld [vmem:[%s0 + $0x78] sm:$0xff]
  %v45 = vld [vmem:[%s0 + $0x80] sm:$0xff]
  %v46 = vld [vmem:[%s0 + $0x88] sm:$0xff]
  %v47 = vld [vmem:[%s0 + $0x90] sm:$0xff]
  %v48 = vld [vmem:[%s0 + $0x98] sm:$0xff]
  %v49 = vld [vmem:[%s0 + $0xa0] sm:$0xff]
  %v50 = vld [vmem:[%s0 + $0xa8] sm:$0xff]
  %v51 = vld [vmem:[%s0 + $0xb0] sm:$0xff]
  %v52 = vld [vmem:[%s0 + $0xb8] sm:$0xff]
  %v53 = vld [vmem:[%s0 + $0xc0] sm:$0xff]
  %v54 = vld [vmem:[%s0 + $0xc8] sm:$0xff]
  %v55 = vld [vmem:[%s0 + $0xd0] sm:$0xff]
  %v56 = vld [vmem:[%s0 + $0xd8] sm:$0xff]
  %v57 = vld [vmem:[%s0 + $0xe0] sm:$0xff]
  %v58 = vld [vmem:[%s0 + $0xe8] sm:$0xff]
  %v59 = vld [vmem:[%s0 + $0xf0] sm:$0xff]
  %v60 = vld [vmem:[%s0 + $0xf8] sm:$0xff]
  %v61 = vld [vmem:[%s0 + $0x100] sm:$0xff]
  %v62 = vld [vmem:[%s0 + $0x108] sm:$0xff]
  %v63 = vld [vmem:[%s0 + $0x110] sm:$0xff]
  %v64 = vld [vmem:[%s0 + $0x118] sm:$0xff]
  %v65 = vld [vmem:[%s0 + $0x120] sm:$0xff]
  %v66 = vld [vmem:[%s0 + $0x128] sm:$0xff]
  %v67 = vld [vmem:[%s0 + $0x130] sm:$0xff]
  %v68 = vld [vmem:[%s0 + $0x138] sm:$0xff]
  %v69 = vld [vmem:[%s0 + $0x140] sm:$0xff]
  %v70 = vld [vmem:[%s0 + $0x148] sm:$0xff]
  %v71 = vld [vmem:[%s0 + $0x150] sm:$0xff]
  %v72 = vld [vmem:[%s0 + $0x158] sm:$0xff]
  %v73 = vld [vmem:[%s0 + $0x160] sm:$0xff]
  %v74 = vld [vmem:[%s0 + $0x168] sm:$0xff]
  %v75 = vld [vmem:[%s0 + $0x170] sm:$0xff]
  %v76 = vld [vmem:[%s0 + $0x178] sm:$0xff]
  %v77 = vld [vmem:[%s0 + $0x180] sm:$0xff]
  %v78 = vld [vmem:[%s0 + $0x188] sm:$0xff]
  %v79 = vld [vmem:[%s0 + $0x190] sm:$0xff]
  %v80 = vld [vmem:[%s0 + $0x198] sm:$0xff]
  %v81 = vld [vmem:[%s0 + $0x1a0] sm:$0xff]
  %v82 = vld [vmem:[%s0 + $0x1a8] sm:$0xff]
  %v83 = vld [vmem:[%s0 + $0x1b0] sm:$0xff]
  %v84 = vld [vmem:[%s0 + $0x1b8] sm:$0xff]
  %v85 = vld [vmem:[%s0 + $0x1c0] sm:$0xff]
  %v86 = vld [vmem:[%s0 + $0x1c8] sm:$0xff]
  %v87 = vld [vmem:[%s0 + $0x1d0] sm:$0xff]
  %v88 = vld [vmem:[%s0 + $0x1d8] sm:$0xff]
  %v89 = vld [vmem:[%s0 + $0x1e0] sm:$0xff]
  %v90 = vld [vmem:[%s0 + $0x1e8] sm:$0xff]
  %v91 = vld [vmem:[%s0 + $0x1f0] sm:$0xff]
  %v92 = vld [vmem:[%s1] sm:$0xff]
  %v93 = vld [vmem:[%s1 + $0x8] sm:$0xff]
  %v94 = vld [vmem:[%s1 + $0x10] sm:$0xff]
  %v95 = vld [vmem:[%s1 + $0x18] sm:$0xff]
  %v96 = vld [vmem:[%s1 + $0x20] sm:$0xff]
  %v97 = vld [vmem:[%s1 + $0x28] sm:$0xff]
  %v98 = vld [vmem:[%s1 + $0x30] sm:$0xff]
  %v99 = vld [vmem:[%s1 + $0x38] sm:$0xff]
  %v100 = vld [vmem:[%s1 + $0x40] sm:$0xff]
  %v101 = vld [vmem:[%s1 + $0x48] sm:$0xff]
  %v102 = vld [vmem:[%s1 + $0x50] sm:$0xff]
  %v103 = vld [vmem:[%s1 + $0x58] sm:$0xff]
  %v104 = vld [vmem:[%s1 + $0x60] sm:$0xff]
  %v105 = vld [vmem:[%s1 + $0x68] sm:$0xff]
  %v106 = vld [vmem:[%s1 + $0x70] sm:$0xff]
  %v107 = vld [vmem:[%s1 + $0x78] sm:$0xff]
  %v108 = vld [vmem:[%s1 + $0x80] sm:$0xff]
  %v109 = vld [vmem:[%s1 + $0x88] sm:$0xff]
  %v110 = vld [vmem:[%s1 + $0x90] sm:$0xff]
  %v111 = vld [vmem:[%s1 + $0x98] sm:$0xff]
  %v112 = vld [vmem:[%s1 + $0xa0] sm:$0xff]
  %v113 = vld [vmem:[%s1 + $0xa8] sm:$0xff]
  %v114 = vld [vmem:[%s1 + $0xb0] sm:$0xff]
  %v115 = vld [vmem:[%s1 + $0xb8] sm:$0xff]
  %v116 = vld [vmem:[%s1 + $0xc0] sm:$0xff]
  %v117 = vld [vmem:[%s1 + $0xc8] sm:$0xff]
  %v118 = vld [vmem:[%s1 + $0xd0] sm:$0xff]
  %v119 = vld [vmem:[%s1 + $0xd8] sm:$0xff]
  %v120 = vld [vmem:[%s1 + $0xe0] sm:$0xff]
  %v121 = vld [vmem:[%s1 + $0xe8] sm:$0xff]
  %v122 = vld [vmem:[%s1 + $0xf0] sm:$0xff]
  %v123 = vld [vmem:[%s1 + $0xf8] sm:$0xff]
  %v124 = vld [vmem:[%s1 + $0x100] sm:$0xff]
  %v125 = vld [vmem:[%s1 + $0x108] sm:$0xff]
  %v126 = vld [vmem:[%s1 + $0x110] sm:$0xff]
  %v127 = vld [vmem:[%s1 + $0x118] sm:$0xff]
  %v128 = vld [vmem:[%s1 + $0x120] sm:$0xff]
  %v129 = vld [vmem:[%s1 + $0x128] sm:$0xff]
  %v130 = vld [vmem:[%s1 + $0x130] sm:$0xff]
  %v131 = vld [vmem:[%s1 + $0x138] sm:$0xff]
  %v132 = vld [vmem:[%s1 + $0x140] sm:$0xff]
  %v133 = vld [vmem:[%s1 + $0x148] sm:$0xff]
  %v134 = vld [vmem:[%s1 + $0x150] sm:$0xff]
  %v135 = vld [vmem:[%s1 + $0x158] sm:$0xff]
  %v136 = vld [vmem:[%s1 + $0x160] sm:$0xff]
  %v137 = vld [vmem:[%s1 + $0x168] sm:$0xff]
  %v138 = vld [vmem:[%s1 + $0x170] sm:$0xff]
  %v139 = vld [vmem:[%s1 + $0x178] sm:$0xff]
  %v140 = vld [vmem:[%s1 + $0x180] sm:$0xff]
  %v141 = vld [vmem:[%s1 + $0x188] sm:$0xff]
  %v142 = vld [vmem:[%s1 + $0x190] sm:$0xff]
  %v143 = vld [vmem:[%s1 + $0x198] sm:$0xff]
  %v144 = vld [vmem:[%s1 + $0x1a0] sm:$0xff]
  %v145 = vld [vmem:[%s1 + $0x1a8] sm:$0xff]
  %v146 = vld [vmem:[%s1 + $0x1b0] sm:$0xff]
  %v147 = vld [vmem:[%s1 + $0x1b8] sm:$0xff]
  %v148 = vld [vmem:[%s1 + $0x1c0] sm:$0xff]
  %v149 = vld [vmem:[%s1 + $0x1c8] sm:$0xff]
  %v150 = vld [vmem:[%s1 + $0x1d0] sm:$0xff]
  %v151 = vld [vmem:[%s1 + $0x1d8] sm:$0xff]
  %v152 = vld [vmem:[%s1 + $0x1e0] sm:$0xff]
  %v153 = vld [vmem:[%s1 + $0x1e8] sm:$0xff]
  %v154 = vld [vmem:[%s1 + $0x1f0] sm:$0xff]
  %v155 = vmul.f32 %v29, %v92
  %v156 = vmul.f32 %v30, %v93
  %v157 = vmul.f32 %v31, %v94
  %v158 = vmul.f32 %v32, %v95
  %v159 = vmul.f32 %v33, %v96
  %v160 = vmul.f32 %v34, %v97
  %v161 = vmul.f32 %v35, %v98
  %v162 = vmul.f32 %v36, %v99
  %v163 = vmul.f32 %v37, %v100
  %v164 = vmul.f32 %v38, %v101
  %v165 = vmul.f32 %v39, %v102
  %v166 = vmul.f32 %v40, %v103
  %v167 = vmul.f32 %v41, %v104
  %v168 = vmul.f32 %v42, %v105
  %v169 = vmul.f32 %v43, %v106
  %v170 = vmul.f32 %v44, %v107
  %v171 = vmul.f32 %v45, %v108
  %v172 = vmul.f32 %v46, %v109
  %v173 = vmul.f32 %v47, %v110
  %v174 = vmul.f32 %v48, %v111
  %v175 = vmul.f32 %v49, %v112
  %v176 = vmul.f32 %v50, %v113
  %v177 = vmul.f32 %v51, %v114
  %v178 = vmul.f32 %v52, %v115
  %v179 = vmul.f32 %v53, %v116
  %v180 = vmul.f32 %v54, %v117
  %v181 = vmul.f32 %v55, %v118
  %v182 = vmul.f32 %v56, %v119
  %v183 = vmul.f32 %v57, %v120
  %v184 = vmul.f32 %v58, %v121
  %v185 = vmul.f32 %v59, %v122
  %v186 = vmul.f32 %v60, %v123
  %v187 = vmul.f32 %v61, %v124
  %v188 = vmul.f32 %v62, %v125
  %v189 = vmul.f32 %v63, %v126
  %v190 = vmul.f32 %v64, %v127
  %v191 = vmul.f32 %v65, %v128
  %v192 = vmul.f32 %v66, %v129
  %v193 = vmul.f32 %v67, %v130
  %v194 = vmul.f32 %v68, %v131
  %v195 = vmul.f32 %v69, %v132
  %v196 = vmul.f32 %v70, %v133
  %v197 = vmul.f32 %v71, %v134
  %v198 = vmul.f32 %v72, %v135
  %v199 = vmul.f32 %v73, %v136
  %v200 = vmul.f32 %v74, %v137
  %v201 = vmul.f32 %v75, %v138
  %v202 = vmul.f32 %v76, %v139
  %v203 = vmul.f32 %v77, %v140
  %v204 = vmul.f32 %v78, %v141
  %v205 = vmul.f32 %v79, %v142
  %v206 = vmul.f32 %v80, %v143
  %v207 = vmul.f32 %v81, %v144
  %v208 = vmul.f32 %v82, %v145
  %v209 = vmul.f32 %v83, %v146
  %v210 = vmul.f32 %v84, %v147
  %v211 = vmul.f32 %v85, %v148
  %v212 = vmul.f32 %v86, %v149
  %v213 = vmul.f32 %v87, %v150
  %v214 = vmul.f32 %v88, %v151
  %v215 = vmul.f32 %v89, %v152
  %v216 = vmul.f32 %v90, %v153
  %v217 = vmul.f32 %v91, %v154
  %v218 = vpack.c.bf16 %v156, %v155
  %v219 = vpack.c.bf16 %v158, %v157
  %v220 = vpack.c.bf16 %v160, %v159
  %v221 = vpack.c.bf16 %v162, %v161
  %v222 = vpack.c.bf16 %v164, %v163
  %v223 = vpack.c.bf16 %v166, %v165
  %v224 = vpack.c.bf16 %v168, %v167
  %v225 = vpack.c.bf16 %v170, %v169
  %v226 = vpack.c.bf16 %v172, %v171
  %v227 = vpack.c.bf16 %v174, %v173
  %v228 = vpack.c.bf16 %v176, %v175
  %v229 = vpack.c.bf16 %v178, %v177
  %v230 = vpack.c.bf16 %v180, %v179
  %v231 = vpack.c.bf16 %v182, %v181
  %v232 = vpack.c.bf16 %v184, %v183
  %v233 = vpack.c.bf16 %v186, %v185
  %v234 = vpack.c.bf16 %v188, %v187
  %v235 = vpack.c.bf16 %v190, %v189
  %v236 = vpack.c.bf16 %v192, %v191
  %v237 = vpack.c.bf16 %v194, %v193
  %v238 = vpack.c.bf16 %v196, %v195
  %v239 = vpack.c.bf16 %v198, %v197
  %v240 = vpack.c.bf16 %v200, %v199
  %v241 = vpack.c.bf16 %v202, %v201
  %v242 = vpack.c.bf16 %v204, %v203
  %v243 = vpack.c.bf16 %v206, %v205
  %v244 = vpack.c.bf16 %v208, %v207
  %v245 = vpack.c.bf16 %v210, %v209
  %v246 = vpack.c.bf16 %v212, %v211
  %v247 = vpack.c.bf16 %v214, %v213
  %v248 = vpack.c.bf16 %v216, %v215
  %v249 = vpack.c.bf16 %v217, %v217
  %v250 = vld [vmem:[%s2] sm:$0xf]
  %v251 = vld [vmem:[%s2 + $0x4] sm:$0xf]
  %v252 = vld [vmem:[%s2 + $0x8] sm:$0xf]
  %v253 = vld [vmem:[%s2 + $0xc] sm:$0xf]
  %v254 = vld [vmem:[%s2 + $0x10] sm:$0xf]
  %v255 = vld [vmem:[%s2 + $0x14] sm:$0xf]
  %v256 = vld [vmem:[%s2 + $0x18] sm:$0xf]
  %v257 = vld [vmem:[%s2 + $0x1c] sm:$0xf]
  %v258 = vld [vmem:[%s2 + $0x20] sm:$0xf]
  %v259 = vld [vmem:[%s2 + $0x24] sm:$0xf]
  %v260 = vld [vmem:[%s2 + $0x28] sm:$0xf]
  %v261 = vld [vmem:[%s2 + $0x2c] sm:$0xf]
  %v262 = vld [vmem:[%s2 + $0x30] sm:$0xf]
  %v263 = vld [vmem:[%s2 + $0x34] sm:$0xf]
  %v264 = vld [vmem:[%s2 + $0x38] sm:$0xf]
  %v265 = vld [vmem:[%s2 + $0x3c] sm:$0xf]
  %v266 = vld [vmem:[%s3] sm:$0x1]
  %v268 = vperm.slane %v266, 0
  %v286 = vunpack.c.l.b16 %v250
  %v287 = vunpack.c.l.b16 %v251
  %v288 = vunpack.c.l.b16 %v252
  %v289 = vunpack.c.l.b16 %v253
  %v290 = vunpack.c.l.b16 %v254
  %v291 = vunpack.c.l.b16 %v255
  %v292 = vunpack.c.l.b16 %v256
  %v293 = vunpack.c.l.b16 %v257
  %v294 = vunpack.c.l.b16 %v258
  %v295 = vunpack.c.l.b16 %v259
  %v296 = vunpack.c.l.b16 %v260
  %v297 = vunpack.c.l.b16 %v261
  %v298 = vunpack.c.l.b16 %v262
  %v299 = vunpack.c.l.b16 %v263
  %v300 = vunpack.c.l.b16 %v264
  %v301 = vunpack.c.l.b16 %v265
  %v302 = vpack.c.b16 %v287, %v286
  %v303 = vpack.c.b16 %v289, %v288
  %v304 = vpack.c.b16 %v291, %v290
  %v305 = vpack.c.b16 %v293, %v292
  %v306 = vpack.c.b16 %v295, %v294
  %v307 = vpack.c.b16 %v297, %v296
  %v308 = vpack.c.b16 %v299, %v298
  %v309 = vpack.c.b16 %v301, %v300
  %318 = vmatpush.bf16.msra.mxu0 %v309
  %319 = vmatpush.bf16.msra.mxu0 %v308
  %320 = vmatpush.bf16.msra.mxu0 %v307
  %321 = vmatpush.bf16.msra.mxu0 %v306
  %322 = vmatpush.bf16.msra.mxu0 %v305
  %323 = vmatpush.bf16.msra.mxu0 %v304
  %324 = vmatpush.bf16.msra.mxu0 %v303
  %325 = vmatpush.bf16.msra.mxu0 %v302
  %326 = vmatmul.bf16.gmra.mxu0 %v218
  %v327 = vpop.f32.mrf.mxu0
  %v328 = vadd.f32 %v268, %v327
  %v329 = vpop.f32.mrf.mxu0
  %v330 = vadd.f32 %v268, %v329
  %331 = vmatmul.bf16.gmra.mxu0 %v219
  %v332 = vpop.f32.mrf.mxu0
  %v333 = vadd.f32 %v268, %v332
  %v334 = vpop.f32.mrf.mxu0
  %v335 = vadd.f32 %v268, %v334
  %336 = vmatmul.bf16.gmra.mxu0 %v220
  %v337 = vpop.f32.mrf.mxu0
  %v338 = vadd.f32 %v268, %v337
  %v339 = vpop.f32.mrf.mxu0
  %v340 = vadd.f32 %v268, %v339
  %341 = vmatmul.bf16.gmra.mxu0 %v221
  %v342 = vpop.f32.mrf.mxu0
  %v343 = vadd.f32 %v268, %v342
  %v344 = vpop.f32.mrf.mxu0
  %v345 = vadd.f32 %v268, %v344
  %346 = vmatmul.bf16.gmra.mxu0 %v222
  %v347 = vpop.f32.mrf.mxu0
  %v348 = vadd.f32 %v268, %v347
  %v349 = vpop.f32.mrf.mxu0
  %v350 = vadd.f32 %v268, %v349
  %351 = vmatmul.bf16.gmra.mxu0 %v223
  %v352 = vpop.f32.mrf.mxu0
  %v353 = vadd.f32 %v268, %v352
  %v354 = vpop.f32.mrf.mxu0
  %v355 = vadd.f32 %v268, %v354
  %356 = vmatmul.bf16.gmra.mxu0 %v224
  %v357 = vpop.f32.mrf.mxu0
  %v358 = vadd.f32 %v268, %v357
  %v359 = vpop.f32.mrf.mxu0
  %v360 = vadd.f32 %v268, %v359
  %361 = vmatmul.bf16.gmra.mxu0 %v225
  %v362 = vpop.f32.mrf.mxu0
  %v363 = vadd.f32 %v268, %v362
  %v364 = vpop.f32.mrf.mxu0
  %v365 = vadd.f32 %v268, %v364
  %366 = vmatmul.bf16.gmra.mxu0 %v226
  %v367 = vpop.f32.mrf.mxu0
  %v368 = vadd.f32 %v268, %v367
  %v369 = vpop.f32.mrf.mxu0
  %v370 = vadd.f32 %v268, %v369
  %371 = vmatmul.bf16.gmra.mxu0 %v227
  %v372 = vpop.f32.mrf.mxu0
  %v373 = vadd.f32 %v268, %v372
  %v374 = vpop.f32.mrf.mxu0
  %v375 = vadd.f32 %v268, %v374
  %376 = vmatmul.bf16.gmra.mxu0 %v228
  %v377 = vpop.f32.mrf.mxu0
  %v378 = vadd.f32 %v268, %v377
  %v379 = vpop.f32.mrf.mxu0
  %v380 = vadd.f32 %v268, %v379
  %381 = vmatmul.bf16.gmra.mxu0 %v229
  %v382 = vpop.f32.mrf.mxu0
  %v383 = vadd.f32 %v268, %v382
  %v384 = vpop.f32.mrf.mxu0
  %v385 = vadd.f32 %v268, %v384
  %386 = vmatmul.bf16.gmra.mxu0 %v230
  %v387 = vpop.f32.mrf.mxu0
  %v388 = vadd.f32 %v268, %v387
  %v389 = vpop.f32.mrf.mxu0
  %v390 = vadd.f32 %v268, %v389
  %391 = vmatmul.bf16.gmra.mxu0 %v231
  %v392 = vpop.f32.mrf.mxu0
  %v393 = vadd.f32 %v268, %v392
  %v394 = vpop.f32.mrf.mxu0
  %v395 = vadd.f32 %v268, %v394
  %396 = vmatmul.bf16.gmra.mxu0 %v232
  %v397 = vpop.f32.mrf.mxu0
  %v398 = vadd.f32 %v268, %v397
  %v399 = vpop.f32.mrf.mxu0
  %v400 = vadd.f32 %v268, %v399
  %401 = vmatmul.bf16.gmra.mxu0 %v233
  %v402 = vpop.f32.mrf.mxu0
  %v403 = vadd.f32 %v268, %v402
  %v404 = vpop.f32.mrf.mxu0
  %v405 = vadd.f32 %v268, %v404
  %406 = vmatmul.bf16.gmra.mxu0 %v234
  %v407 = vpop.f32.mrf.mxu0
  %v408 = vadd.f32 %v268, %v407
  %v409 = vpop.f32.mrf.mxu0
  %v410 = vadd.f32 %v268, %v409
  %411 = vmatmul.bf16.gmra.mxu0 %v235
  %v412 = vpop.f32.mrf.mxu0
  %v413 = vadd.f32 %v268, %v412
  %v414 = vpop.f32.mrf.mxu0
  %v415 = vadd.f32 %v268, %v414
  %416 = vmatmul.bf16.gmra.mxu0 %v236
  %v417 = vpop.f32.mrf.mxu0
  %v418 = vadd.f32 %v268, %v417
  %v419 = vpop.f32.mrf.mxu0
  %v420 = vadd.f32 %v268, %v419
  %421 = vmatmul.bf16.gmra.mxu0 %v237
  %v422 = vpop.f32.mrf.mxu0
  %v423 = vadd.f32 %v268, %v422
  %v424 = vpop.f32.mrf.mxu0
  %v425 = vadd.f32 %v268, %v424
  %426 = vmatmul.bf16.gmra.mxu0 %v238
  %v427 = vpop.f32.mrf.mxu0
  %v428 = vadd.f32 %v268, %v427
  %v429 = vpop.f32.mrf.mxu0
  %v430 = vadd.f32 %v268, %v429
  %431 = vmatmul.bf16.gmra.mxu0 %v239
  %v432 = vpop.f32.mrf.mxu0
  %v433 = vadd.f32 %v268, %v432
  %v434 = vpop.f32.mrf.mxu0
  %v435 = vadd.f32 %v268, %v434
  %436 = vmatmul.bf16.gmra.mxu0 %v240
  %v437 = vpop.f32.mrf.mxu0
  %v438 = vadd.f32 %v268, %v437
  %v439 = vpop.f32.mrf.mxu0
  %v440 = vadd.f32 %v268, %v439
  %441 = vmatmul.bf16.gmra.mxu0 %v241
  %v442 = vpop.f32.mrf.mxu0
  %v443 = vadd.f32 %v268, %v442
  %v444 = vpop.f32.mrf.mxu0
  %v445 = vadd.f32 %v268, %v444
  %446 = vmatmul.bf16.gmra.mxu0 %v242
  %v447 = vpop.f32.mrf.mxu0
  %v448 = vadd.f32 %v268, %v447
  %v449 = vpop.f32.mrf.mxu0
  %v450 = vadd.f32 %v268, %v449
  %451 = vmatmul.bf16.gmra.mxu0 %v243
  %v452 = vpop.f32.mrf.mxu0
  %v453 = vadd.f32 %v268, %v452
  %v454 = vpop.f32.mrf.mxu0
  %v455 = vadd.f32 %v268, %v454
  %456 = vmatmul.bf16.gmra.mxu0 %v244
  %v457 = vpop.f32.mrf.mxu0
  %v458 = vadd.f32 %v268, %v457
  %v459 = vpop.f32.mrf.mxu0
  %v460 = vadd.f32 %v268, %v459
  %461 = vmatmul.bf16.gmra.mxu0 %v245
  %v462 = vpop.f32.mrf.mxu0
  %v463 = vadd.f32 %v268, %v462
  %v464 = vpop.f32.mrf.mxu0
  %v465 = vadd.f32 %v268, %v464
  %466 = vmatmul.bf16.gmra.mxu0 %v246
  %v467 = vpop.f32.mrf.mxu0
  %v468 = vadd.f32 %v268, %v467
  %v469 = vpop.f32.mrf.mxu0
  %v470 = vadd.f32 %v268, %v469
  %471 = vmatmul.bf16.gmra.mxu0 %v247
  %v472 = vpop.f32.mrf.mxu0
  %v473 = vadd.f32 %v268, %v472
  %v474 = vpop.f32.mrf.mxu0
  %v475 = vadd.f32 %v268, %v474
  %476 = vmatmul.bf16.gmra.mxu0 %v248
  %v477 = vpop.f32.mrf.mxu0
  %v478 = vadd.f32 %v268, %v477
  %v479 = vpop.f32.mrf.mxu0
  %v480 = vadd.f32 %v268, %v479
  %481 = vmatmul.bf16.gmra.mxu0 %v249
  %v482 = vpop.f32.mrf.mxu0
  %v483 = vadd.f32 %v268, %v482
  %v484 = vpop.f32.mrf.mxu0
  %485 = vdwg.mxu0
  %v486 = vmax.f32 %v328, 0.0
  %v487 = vmax.f32 %v330, 0.0
  %v488 = vmax.f32 %v333, 0.0
  %v489 = vmax.f32 %v335, 0.0
  %v490 = vmax.f32 %v338, 0.0
  %v491 = vmax.f32 %v340, 0.0
  %v492 = vmax.f32 %v343, 0.0
  %v493 = vmax.f32 %v345, 0.0
  %v494 = vmax.f32 %v348, 0.0
  %v495 = vmax.f32 %v350, 0.0
  %v496 = vmax.f32 %v353, 0.0
  %v497 = vmax.f32 %v355, 0.0
  %v498 = vmax.f32 %v358, 0.0
  %v499 = vmax.f32 %v360, 0.0
  %v500 = vmax.f32 %v363, 0.0
  %v501 = vmax.f32 %v365, 0.0
  %v502 = vmax.f32 %v368, 0.0
  %v503 = vmax.f32 %v370, 0.0
  %v504 = vmax.f32 %v373, 0.0
  %v505 = vmax.f32 %v375, 0.0
  %v506 = vmax.f32 %v378, 0.0
  %v507 = vmax.f32 %v380, 0.0
  %v508 = vmax.f32 %v383, 0.0
  %v509 = vmax.f32 %v385, 0.0
  %v510 = vmax.f32 %v388, 0.0
  %v511 = vmax.f32 %v390, 0.0
  %v512 = vmax.f32 %v393, 0.0
  %v513 = vmax.f32 %v395, 0.0
  %v514 = vmax.f32 %v398, 0.0
  %v515 = vmax.f32 %v400, 0.0
  %v516 = vmax.f32 %v403, 0.0
  %v517 = vmax.f32 %v405, 0.0
  %v518 = vmax.f32 %v408, 0.0
  %v519 = vmax.f32 %v410, 0.0
  %v520 = vmax.f32 %v413, 0.0
  %v521 = vmax.f32 %v415, 0.0
  %v522 = vmax.f32 %v418, 0.0
  %v523 = vmax.f32 %v420, 0.0
  %v524 = vmax.f32 %v423, 0.0
  %v525 = vmax.f32 %v425, 0.0
  %v526 = vmax.f32 %v428, 0.0
  %v527 = vmax.f32 %v430, 0.0
  %v528 = vmax.f32 %v433, 0.0
  %v529 = vmax.f32 %v435, 0.0
  %v530 = vmax.f32 %v438, 0.0
  %v531 = vmax.f32 %v440, 0.0
  %v532 = vmax.f32 %v443, 0.0
  %v533 = vmax.f32 %v445, 0.0
  %v534 = vmax.f32 %v448, 0.0
  %v535 = vmax.f32 %v450, 0.0
  %v536 = vmax.f32 %v453, 0.0
  %v537 = vmax.f32 %v455, 0.0
  %v538 = vmax.f32 %v458, 0.0
  %v539 = vmax.f32 %v460, 0.0
  %v540 = vmax.f32 %v463, 0.0
  %v541 = vmax.f32 %v465, 0.0
  %v542 = vmax.f32 %v468, 0.0
  %v543 = vmax.f32 %v470, 0.0
  %v544 = vmax.f32 %v473, 0.0
  %v545 = vmax.f32 %v475, 0.0
  %v546 = vmax.f32 %v478, 0.0
  %v547 = vmax.f32 %v480, 0.0
  %v548 = vmax.f32 %v483, 0.0
  %v549 = vpack.c.bf16 %v487, %v486
  %v550 = vpack.c.bf16 %v489, %v488
  %v551 = vpack.c.bf16 %v491, %v490
  %v552 = vpack.c.bf16 %v493, %v492
  %v553 = vpack.c.bf16 %v495, %v494
  %v554 = vpack.c.bf16 %v497, %v496
  %v555 = vpack.c.bf16 %v499, %v498
  %v556 = vpack.c.bf16 %v501, %v500
  %v557 = vpack.c.bf16 %v503, %v502
  %v558 = vpack.c.bf16 %v505, %v504
  %v559 = vpack.c.bf16 %v507, %v506
  %v560 = vpack.c.bf16 %v509, %v508
  %v561 = vpack.c.bf16 %v511, %v510
  %v562 = vpack.c.bf16 %v513, %v512
  %v563 = vpack.c.bf16 %v515, %v514
  %v564 = vpack.c.bf16 %v517, %v516
  %v565 = vpack.c.bf16 %v519, %v518
  %v566 = vpack.c.bf16 %v521, %v520
  %v567 = vpack.c.bf16 %v523, %v522
  %v568 = vpack.c.bf16 %v525, %v524
  %v569 = vpack.c.bf16 %v527, %v526
  %v570 = vpack.c.bf16 %v529, %v528
  %v571 = vpack.c.bf16 %v531, %v530
  %v572 = vpack.c.bf16 %v533, %v532
  %v573 = vpack.c.bf16 %v535, %v534
  %v574 = vpack.c.bf16 %v537, %v536
  %v575 = vpack.c.bf16 %v539, %v538
  %v576 = vpack.c.bf16 %v541, %v540
  %v577 = vpack.c.bf16 %v543, %v542
  %v578 = vpack.c.bf16 %v545, %v544
  %v579 = vpack.c.bf16 %v547, %v546
  %v580 = vpack.c.bf16 %v548, %v548
  %v581 = vld [vmem:[%s4] sm:$0xf]
  %v582 = vld [vmem:[%s4 + $0x4] sm:$0xf]
  %v583 = vld [vmem:[%s4 + $0x8] sm:$0xf]
  %v584 = vld [vmem:[%s4 + $0xc] sm:$0xf]
  %v585 = vld [vmem:[%s4 + $0x10] sm:$0xf]
  %v586 = vld [vmem:[%s4 + $0x14] sm:$0xf]
  %v587 = vld [vmem:[%s4 + $0x18] sm:$0xf]
  %v588 = vld [vmem:[%s4 + $0x1c] sm:$0xf]
  %v589 = vld [vmem:[%s4 + $0x20] sm:$0xf]
  %v590 = vld [vmem:[%s4 + $0x24] sm:$0xf]
  %v591 = vld [vmem:[%s4 + $0x28] sm:$0xf]
  %v592 = vld [vmem:[%s4 + $0x2c] sm:$0xf]
  %v593 = vld [vmem:[%s4 + $0x30] sm:$0xf]
  %v594 = vld [vmem:[%s4 + $0x34] sm:$0xf]
  %v595 = vld [vmem:[%s4 + $0x38] sm:$0xf]
  %v596 = vld [vmem:[%s4 + $0x3c] sm:$0xf]
  %v597 = vld [vmem:[%s5] sm:$0x1]
  %v599 = vperm.slane %v597, 0
  %v617 = vunpack.c.l.b16 %v581
  %v618 = vunpack.c.l.b16 %v582
  %v619 = vunpack.c.l.b16 %v583
  %v620 = vunpack.c.l.b16 %v584
  %v621 = vunpack.c.l.b16 %v585
  %v622 = vunpack.c.l.b16 %v586
  %v623 = vunpack.c.l.b16 %v587
  %v624 = vunpack.c.l.b16 %v588
  %v625 = vunpack.c.l.b16 %v589
  %v626 = vunpack.c.l.b16 %v590
  %v627 = vunpack.c.l.b16 %v591
  %v628 = vunpack.c.l.b16 %v592
  %v629 = vunpack.c.l.b16 %v593
  %v630 = vunpack.c.l.b16 %v594
  %v631 = vunpack.c.l.b16 %v595
  %v632 = vunpack.c.l.b16 %v596
  %v633 = vpack.c.b16 %v618, %v617
  %v634 = vpack.c.b16 %v620, %v619
  %v635 = vpack.c.b16 %v622, %v621
  %v636 = vpack.c.b16 %v624, %v623
  %v637 = vpack.c.b16 %v626, %v625
  %v638 = vpack.c.b16 %v628, %v627
  %v639 = vpack.c.b16 %v630, %v629
  %v640 = vpack.c.b16 %v632, %v631
  %649 = vmatpush.bf16.msra.mxu0 %v640
  %650 = vmatpush.bf16.msra.mxu0 %v639
  %651 = vmatpush.bf16.msra.mxu0 %v638
  %652 = vmatpush.bf16.msra.mxu0 %v637
  %653 = vmatpush.bf16.msra.mxu0 %v636
  %654 = vmatpush.bf16.msra.mxu0 %v635
  %655 = vmatpush.bf16.msra.mxu0 %v634
  %656 = vmatpush.bf16.msra.mxu0 %v633
  %657 = vmatmul.bf16.gmra.mxu0 %v549
  %v658 = vpop.f32.mrf.mxu0
  %v659 = vadd.f32 %v599, %v658
  %v660 = vpop.f32.mrf.mxu0
  %v661 = vadd.f32 %v599, %v660
  %662 = vmatmul.bf16.gmra.mxu0 %v550
  %v663 = vpop.f32.mrf.mxu0
  %v664 = vadd.f32 %v599, %v663
  %v665 = vpop.f32.mrf.mxu0
  %v666 = vadd.f32 %v599, %v665
  %667 = vmatmul.bf16.gmra.mxu0 %v551
  %v668 = vpop.f32.mrf.mxu0
  %v669 = vadd.f32 %v599, %v668
  %v670 = vpop.f32.mrf.mxu0
  %v671 = vadd.f32 %v599, %v670
  %672 = vmatmul.bf16.gmra.mxu0 %v552
  %v673 = vpop.f32.mrf.mxu0
  %v674 = vadd.f32 %v599, %v673
  %v675 = vpop.f32.mrf.mxu0
  %v676 = vadd.f32 %v599, %v675
  %677 = vmatmul.bf16.gmra.mxu0 %v553
  %v678 = vpop.f32.mrf.mxu0
  %v679 = vadd.f32 %v599, %v678
  %v680 = vpop.f32.mrf.mxu0
  %v681 = vadd.f32 %v599, %v680
  %682 = vmatmul.bf16.gmra.mxu0 %v554
  %v683 = vpop.f32.mrf.mxu0
  %v684 = vadd.f32 %v599, %v683
  %v685 = vpop.f32.mrf.mxu0
  %v686 = vadd.f32 %v599, %v685
  %687 = vmatmul.bf16.gmra.mxu0 %v555
  %v688 = vpop.f32.mrf.mxu0
  %v689 = vadd.f32 %v599, %v688
  %v690 = vpop.f32.mrf.mxu0
  %v691 = vadd.f32 %v599, %v690
  %692 = vmatmul.bf16.gmra.mxu0 %v556
  %v693 = vpop.f32.mrf.mxu0
  %v694 = vadd.f32 %v599, %v693
  %v695 = vpop.f32.mrf.mxu0
  %v696 = vadd.f32 %v599, %v695
  %697 = vmatmul.bf16.gmra.mxu0 %v557
  %v698 = vpop.f32.mrf.mxu0
  %v699 = vadd.f32 %v599, %v698
  %v700 = vpop.f32.mrf.mxu0
  %v701 = vadd.f32 %v599, %v700
  %702 = vmatmul.bf16.gmra.mxu0 %v558
  %v703 = vpop.f32.mrf.mxu0
  %v704 = vadd.f32 %v599, %v703
  %v705 = vpop.f32.mrf.mxu0
  %v706 = vadd.f32 %v599, %v705
  %707 = vmatmul.bf16.gmra.mxu0 %v559
  %v708 = vpop.f32.mrf.mxu0
  %v709 = vadd.f32 %v599, %v708
  %v710 = vpop.f32.mrf.mxu0
  %v711 = vadd.f32 %v599, %v710
  %712 = vmatmul.bf16.gmra.mxu0 %v560
  %v713 = vpop.f32.mrf.mxu0
  %v714 = vadd.f32 %v599, %v713
  %v715 = vpop.f32.mrf.mxu0
  %v716 = vadd.f32 %v599, %v715
  %717 = vmatmul.bf16.gmra.mxu0 %v561
  %v718 = vpop.f32.mrf.mxu0
  %v719 = vadd.f32 %v599, %v718
  %v720 = vpop.f32.mrf.mxu0
  %v721 = vadd.f32 %v599, %v720
  %722 = vmatmul.bf16.gmra.mxu0 %v562
  %v723 = vpop.f32.mrf.mxu0
  %v724 = vadd.f32 %v599, %v723
  %v725 = vpop.f32.mrf.mxu0
  %v726 = vadd.f32 %v599, %v725
  %727 = vmatmul.bf16.gmra.mxu0 %v563
  %v728 = vpop.f32.mrf.mxu0
  %v729 = vadd.f32 %v599, %v728
  %v730 = vpop.f32.mrf.mxu0
  %v731 = vadd.f32 %v599, %v730
  %732 = vmatmul.bf16.gmra.mxu0 %v564
  %v733 = vpop.f32.mrf.mxu0
  %v734 = vadd.f32 %v599, %v733
  %v735 = vpop.f32.mrf.mxu0
  %v736 = vadd.f32 %v599, %v735
  %737 = vmatmul.bf16.gmra.mxu0 %v565
  %v738 = vpop.f32.mrf.mxu0
  %v739 = vadd.f32 %v599, %v738
  %v740 = vpop.f32.mrf.mxu0
  %v741 = vadd.f32 %v599, %v740
  %742 = vmatmul.bf16.gmra.mxu0 %v566
  %v743 = vpop.f32.mrf.mxu0
  %v744 = vadd.f32 %v599, %v743
  %v745 = vpop.f32.mrf.mxu0
  %v746 = vadd.f32 %v599, %v745
  %747 = vmatmul.bf16.gmra.mxu0 %v567
  %v748 = vpop.f32.mrf.mxu0
  %v749 = vadd.f32 %v599, %v748
  %v750 = vpop.f32.mrf.mxu0
  %v751 = vadd.f32 %v599, %v750
  %752 = vmatmul.bf16.gmra.mxu0 %v568
  %v753 = vpop.f32.mrf.mxu0
  %v754 = vadd.f32 %v599, %v753
  %v755 = vpop.f32.mrf.mxu0
  %v756 = vadd.f32 %v599, %v755
  %757 = vmatmul.bf16.gmra.mxu0 %v569
  %v758 = vpop.f32.mrf.mxu0
  %v759 = vadd.f32 %v599, %v758
  %v760 = vpop.f32.mrf.mxu0
  %v761 = vadd.f32 %v599, %v760
  %762 = vmatmul.bf16.gmra.mxu0 %v570
  %v763 = vpop.f32.mrf.mxu0
  %v764 = vadd.f32 %v599, %v763
  %v765 = vpop.f32.mrf.mxu0
  %v766 = vadd.f32 %v599, %v765
  %767 = vmatmul.bf16.gmra.mxu0 %v571
  %v768 = vpop.f32.mrf.mxu0
  %v769 = vadd.f32 %v599, %v768
  %v770 = vpop.f32.mrf.mxu0
  %v771 = vadd.f32 %v599, %v770
  %772 = vmatmul.bf16.gmra.mxu0 %v572
  %v773 = vpop.f32.mrf.mxu0
  %v774 = vadd.f32 %v599, %v773
  %v775 = vpop.f32.mrf.mxu0
  %v776 = vadd.f32 %v599, %v775
  %777 = vmatmul.bf16.gmra.mxu0 %v573
  %v778 = vpop.f32.mrf.mxu0
  %v779 = vadd.f32 %v599, %v778
  %v780 = vpop.f32.mrf.mxu0
  %v781 = vadd.f32 %v599, %v780
  %782 = vmatmul.bf16.gmra.mxu0 %v574
  %v783 = vpop.f32.mrf.mxu0
  %v784 = vadd.f32 %v599, %v783
  %v785 = vpop.f32.mrf.mxu0
  %v786 = vadd.f32 %v599, %v785
  %787 = vmatmul.bf16.gmra.mxu0 %v575
  %v788 = vpop.f32.mrf.mxu0
  %v789 = vadd.f32 %v599, %v788
  %v790 = vpop.f32.mrf.mxu0
  %v791 = vadd.f32 %v599, %v790
  %792 = vmatmul.bf16.gmra.mxu0 %v576
  %v793 = vpop.f32.mrf.mxu0
  %v794 = vadd.f32 %v599, %v793
  %v795 = vpop.f32.mrf.mxu0
  %v796 = vadd.f32 %v599, %v795
  %797 = vmatmul.bf16.gmra.mxu0 %v577
  %v798 = vpop.f32.mrf.mxu0
  %v799 = vadd.f32 %v599, %v798
  %v800 = vpop.f32.mrf.mxu0
  %v801 = vadd.f32 %v599, %v800
  %802 = vmatmul.bf16.gmra.mxu0 %v578
  %v803 = vpop.f32.mrf.mxu0
  %v804 = vadd.f32 %v599, %v803
  %v805 = vpop.f32.mrf.mxu0
  %v806 = vadd.f32 %v599, %v805
  %807 = vmatmul.bf16.gmra.mxu0 %v579
  %v808 = vpop.f32.mrf.mxu0
  %v809 = vadd.f32 %v599, %v808
  %v810 = vpop.f32.mrf.mxu0
  %v811 = vadd.f32 %v599, %v810
  %812 = vmatmul.bf16.gmra.mxu0 %v580
  %v813 = vpop.f32.mrf.mxu0
  %v814 = vadd.f32 %v599, %v813
  %v815 = vpop.f32.mrf.mxu0
  %816 = vdwg.mxu0
  %v817 = vmax.f32 %v659, 0.0
  %v818 = vmax.f32 %v661, 0.0
  %v819 = vmax.f32 %v664, 0.0
  %v820 = vmax.f32 %v666, 0.0
  %v821 = vmax.f32 %v669, 0.0
  %v822 = vmax.f32 %v671, 0.0
  %v823 = vmax.f32 %v674, 0.0
  %v824 = vmax.f32 %v676, 0.0
  %v825 = vmax.f32 %v679, 0.0
  %v826 = vmax.f32 %v681, 0.0
  %v827 = vmax.f32 %v684, 0.0
  %v828 = vmax.f32 %v686, 0.0
  %v829 = vmax.f32 %v689, 0.0
  %v830 = vmax.f32 %v691, 0.0
  %v831 = vmax.f32 %v694, 0.0
  %v832 = vmax.f32 %v696, 0.0
  %v833 = vmax.f32 %v699, 0.0
  %v834 = vmax.f32 %v701, 0.0
  %v835 = vmax.f32 %v704, 0.0
  %v836 = vmax.f32 %v706, 0.0
  %v837 = vmax.f32 %v709, 0.0
  %v838 = vmax.f32 %v711, 0.0
  %v839 = vmax.f32 %v714, 0.0
  %v840 = vmax.f32 %v716, 0.0
  %v841 = vmax.f32 %v719, 0.0
  %v842 = vmax.f32 %v721, 0.0
  %v843 = vmax.f32 %v724, 0.0
  %v844 = vmax.f32 %v726, 0.0
  %v845 = vmax.f32 %v729, 0.0
  %v846 = vmax.f32 %v731, 0.0
  %v847 = vmax.f32 %v734, 0.0
  %v848 = vmax.f32 %v736, 0.0
  %v849 = vmax.f32 %v739, 0.0
  %v850 = vmax.f32 %v741, 0.0
  %v851 = vmax.f32 %v744, 0.0
  %v852 = vmax.f32 %v746, 0.0
  %v853 = vmax.f32 %v749, 0.0
  %v854 = vmax.f32 %v751, 0.0
  %v855 = vmax.f32 %v754, 0.0
  %v856 = vmax.f32 %v756, 0.0
  %v857 = vmax.f32 %v759, 0.0
  %v858 = vmax.f32 %v761, 0.0
  %v859 = vmax.f32 %v764, 0.0
  %v860 = vmax.f32 %v766, 0.0
  %v861 = vmax.f32 %v769, 0.0
  %v862 = vmax.f32 %v771, 0.0
  %v863 = vmax.f32 %v774, 0.0
  %v864 = vmax.f32 %v776, 0.0
  %v865 = vmax.f32 %v779, 0.0
  %v866 = vmax.f32 %v781, 0.0
  %v867 = vmax.f32 %v784, 0.0
  %v868 = vmax.f32 %v786, 0.0
  %v869 = vmax.f32 %v789, 0.0
  %v870 = vmax.f32 %v791, 0.0
  %v871 = vmax.f32 %v794, 0.0
  %v872 = vmax.f32 %v796, 0.0
  %v873 = vmax.f32 %v799, 0.0
  %v874 = vmax.f32 %v801, 0.0
  %v875 = vmax.f32 %v804, 0.0
  %v876 = vmax.f32 %v806, 0.0
  %v877 = vmax.f32 %v809, 0.0
  %v878 = vmax.f32 %v811, 0.0
  %v879 = vmax.f32 %v814, 0.0
  %v880 = vpack.c.bf16 %v818, %v817
  %v881 = vpack.c.bf16 %v820, %v819
  %v882 = vpack.c.bf16 %v822, %v821
  %v883 = vpack.c.bf16 %v824, %v823
  %v884 = vpack.c.bf16 %v826, %v825
  %v885 = vpack.c.bf16 %v828, %v827
  %v886 = vpack.c.bf16 %v830, %v829
  %v887 = vpack.c.bf16 %v832, %v831
  %v888 = vpack.c.bf16 %v834, %v833
  %v889 = vpack.c.bf16 %v836, %v835
  %v890 = vpack.c.bf16 %v838, %v837
  %v891 = vpack.c.bf16 %v840, %v839
  %v892 = vpack.c.bf16 %v842, %v841
  %v893 = vpack.c.bf16 %v844, %v843
  %v894 = vpack.c.bf16 %v846, %v845
  %v895 = vpack.c.bf16 %v848, %v847
  %v896 = vpack.c.bf16 %v850, %v849
  %v897 = vpack.c.bf16 %v852, %v851
  %v898 = vpack.c.bf16 %v854, %v853
  %v899 = vpack.c.bf16 %v856, %v855
  %v900 = vpack.c.bf16 %v858, %v857
  %v901 = vpack.c.bf16 %v860, %v859
  %v902 = vpack.c.bf16 %v862, %v861
  %v903 = vpack.c.bf16 %v864, %v863
  %v904 = vpack.c.bf16 %v866, %v865
  %v905 = vpack.c.bf16 %v868, %v867
  %v906 = vpack.c.bf16 %v870, %v869
  %v907 = vpack.c.bf16 %v872, %v871
  %v908 = vpack.c.bf16 %v874, %v873
  %v909 = vpack.c.bf16 %v876, %v875
  %v910 = vpack.c.bf16 %v878, %v877
  %v911 = vpack.c.bf16 %v879, %v879
  %v912 = vld [vmem:[%s6] sm:$0xf]
  %v913 = vld [vmem:[%s6 + $0x4] sm:$0xf]
  %v914 = vld [vmem:[%s6 + $0x8] sm:$0xf]
  %v915 = vld [vmem:[%s6 + $0xc] sm:$0xf]
  %v916 = vld [vmem:[%s6 + $0x10] sm:$0xf]
  %v917 = vld [vmem:[%s6 + $0x14] sm:$0xf]
  %v918 = vld [vmem:[%s6 + $0x18] sm:$0xf]
  %v919 = vld [vmem:[%s6 + $0x1c] sm:$0xf]
  %v920 = vld [vmem:[%s6 + $0x20] sm:$0xf]
  %v921 = vld [vmem:[%s6 + $0x24] sm:$0xf]
  %v922 = vld [vmem:[%s6 + $0x28] sm:$0xf]
  %v923 = vld [vmem:[%s6 + $0x2c] sm:$0xf]
  %v924 = vld [vmem:[%s6 + $0x30] sm:$0xf]
  %v925 = vld [vmem:[%s6 + $0x34] sm:$0xf]
  %v926 = vld [vmem:[%s6 + $0x38] sm:$0xf]
  %v927 = vld [vmem:[%s6 + $0x3c] sm:$0xf]
  %v928 = vld [vmem:[%s7] sm:$0x1]
  %v930 = vperm.slane %v928, 0
  %v948 = vunpack.c.l.b16 %v912
  %v949 = vunpack.c.l.b16 %v913
  %v950 = vunpack.c.l.b16 %v914
  %v951 = vunpack.c.l.b16 %v915
  %v952 = vunpack.c.l.b16 %v916
  %v953 = vunpack.c.l.b16 %v917
  %v954 = vunpack.c.l.b16 %v918
  %v955 = vunpack.c.l.b16 %v919
  %v956 = vunpack.c.l.b16 %v920
  %v957 = vunpack.c.l.b16 %v921
  %v958 = vunpack.c.l.b16 %v922
  %v959 = vunpack.c.l.b16 %v923
  %v960 = vunpack.c.l.b16 %v924
  %v961 = vunpack.c.l.b16 %v925
  %v962 = vunpack.c.l.b16 %v926
  %v963 = vunpack.c.l.b16 %v927
  %v964 = vpack.c.b16 %v949, %v948
  %v965 = vpack.c.b16 %v951, %v950
  %v966 = vpack.c.b16 %v953, %v952
  %v967 = vpack.c.b16 %v955, %v954
  %v968 = vpack.c.b16 %v957, %v956
  %v969 = vpack.c.b16 %v959, %v958
  %v970 = vpack.c.b16 %v961, %v960
  %v971 = vpack.c.b16 %v963, %v962
  %980 = vmatpush.bf16.msra.mxu0 %v971
  %981 = vmatpush.bf16.msra.mxu0 %v970
  %982 = vmatpush.bf16.msra.mxu0 %v969
  %983 = vmatpush.bf16.msra.mxu0 %v968
  %984 = vmatpush.bf16.msra.mxu0 %v967
  %985 = vmatpush.bf16.msra.mxu0 %v966
  %986 = vmatpush.bf16.msra.mxu0 %v965
  %987 = vmatpush.bf16.msra.mxu0 %v964
  %988 = vmatmul.bf16.gmra.mxu0 %v880
  %v989 = vpop.f32.mrf.mxu0
  %v990 = vadd.f32 %v930, %v989
  %v991 = vpop.f32.mrf.mxu0
  %v992 = vadd.f32 %v930, %v991
  %993 = vmatmul.bf16.gmra.mxu0 %v881
  %v994 = vpop.f32.mrf.mxu0
  %v995 = vadd.f32 %v930, %v994
  %v996 = vpop.f32.mrf.mxu0
  %v997 = vadd.f32 %v930, %v996
  %998 = vmatmul.bf16.gmra.mxu0 %v882
  %v999 = vpop.f32.mrf.mxu0
  %v1000 = vadd.f32 %v930, %v999
  %v1001 = vpop.f32.mrf.mxu0
  %v1002 = vadd.f32 %v930, %v1001
  %1003 = vmatmul.bf16.gmra.mxu0 %v883
  %v1004 = vpop.f32.mrf.mxu0
  %v1005 = vadd.f32 %v930, %v1004
  %v1006 = vpop.f32.mrf.mxu0
  %v1007 = vadd.f32 %v930, %v1006
  %1008 = vmatmul.bf16.gmra.mxu0 %v884
  %v1009 = vpop.f32.mrf.mxu0
  %v1010 = vadd.f32 %v930, %v1009
  %v1011 = vpop.f32.mrf.mxu0
  %v1012 = vadd.f32 %v930, %v1011
  %1013 = vmatmul.bf16.gmra.mxu0 %v885
  %v1014 = vpop.f32.mrf.mxu0
  %v1015 = vadd.f32 %v930, %v1014
  %v1016 = vpop.f32.mrf.mxu0
  %v1017 = vadd.f32 %v930, %v1016
  %1018 = vmatmul.bf16.gmra.mxu0 %v886
  %v1019 = vpop.f32.mrf.mxu0
  %v1020 = vadd.f32 %v930, %v1019
  %v1021 = vpop.f32.mrf.mxu0
  %v1022 = vadd.f32 %v930, %v1021
  %1023 = vmatmul.bf16.gmra.mxu0 %v887
  %v1024 = vpop.f32.mrf.mxu0
  %v1025 = vadd.f32 %v930, %v1024
  %v1026 = vpop.f32.mrf.mxu0
  %v1027 = vadd.f32 %v930, %v1026
  %1028 = vmatmul.bf16.gmra.mxu0 %v888
  %v1029 = vpop.f32.mrf.mxu0
  %v1030 = vadd.f32 %v930, %v1029
  %v1031 = vpop.f32.mrf.mxu0
  %v1032 = vadd.f32 %v930, %v1031
  %1033 = vmatmul.bf16.gmra.mxu0 %v889
  %v1034 = vpop.f32.mrf.mxu0
  %v1035 = vadd.f32 %v930, %v1034
  %v1036 = vpop.f32.mrf.mxu0
  %v1037 = vadd.f32 %v930, %v1036
  %1038 = vmatmul.bf16.gmra.mxu0 %v890
  %v1039 = vpop.f32.mrf.mxu0
  %v1040 = vadd.f32 %v930, %v1039
  %v1041 = vpop.f32.mrf.mxu0
  %v1042 = vadd.f32 %v930, %v1041
  %1043 = vmatmul.bf16.gmra.mxu0 %v891
  %v1044 = vpop.f32.mrf.mxu0
  %v1045 = vadd.f32 %v930, %v1044
  %v1046 = vpop.f32.mrf.mxu0
  %v1047 = vadd.f32 %v930, %v1046
  %1048 = vmatmul.bf16.gmra.mxu0 %v892
  %v1049 = vpop.f32.mrf.mxu0
  %v1050 = vadd.f32 %v930, %v1049
  %v1051 = vpop.f32.mrf.mxu0
  %v1052 = vadd.f32 %v930, %v1051
  %1053 = vmatmul.bf16.gmra.mxu0 %v893
  %v1054 = vpop.f32.mrf.mxu0
  %v1055 = vadd.f32 %v930, %v1054
  %v1056 = vpop.f32.mrf.mxu0
  %v1057 = vadd.f32 %v930, %v1056
  %1058 = vmatmul.bf16.gmra.mxu0 %v894
  %v1059 = vpop.f32.mrf.mxu0
  %v1060 = vadd.f32 %v930, %v1059
  %v1061 = vpop.f32.mrf.mxu0
  %v1062 = vadd.f32 %v930, %v1061
  %1063 = vmatmul.bf16.gmra.mxu0 %v895
  %v1064 = vpop.f32.mrf.mxu0
  %v1065 = vadd.f32 %v930, %v1064
  %v1066 = vpop.f32.mrf.mxu0
  %v1067 = vadd.f32 %v930, %v1066
  %1068 = vmatmul.bf16.gmra.mxu0 %v896
  %v1069 = vpop.f32.mrf.mxu0
  %v1070 = vadd.f32 %v930, %v1069
  %v1071 = vpop.f32.mrf.mxu0
  %v1072 = vadd.f32 %v930, %v1071
  %1073 = vmatmul.bf16.gmra.mxu0 %v897
  %v1074 = vpop.f32.mrf.mxu0
  %v1075 = vadd.f32 %v930, %v1074
  %v1076 = vpop.f32.mrf.mxu0
  %v1077 = vadd.f32 %v930, %v1076
  %1078 = vmatmul.bf16.gmra.mxu0 %v898
  %v1079 = vpop.f32.mrf.mxu0
  %v1080 = vadd.f32 %v930, %v1079
  %v1081 = vpop.f32.mrf.mxu0
  %v1082 = vadd.f32 %v930, %v1081
  %1083 = vmatmul.bf16.gmra.mxu0 %v899
  %v1084 = vpop.f32.mrf.mxu0
  %v1085 = vadd.f32 %v930, %v1084
  %v1086 = vpop.f32.mrf.mxu0
  %v1087 = vadd.f32 %v930, %v1086
  %1088 = vmatmul.bf16.gmra.mxu0 %v900
  %v1089 = vpop.f32.mrf.mxu0
  %v1090 = vadd.f32 %v930, %v1089
  %v1091 = vpop.f32.mrf.mxu0
  %v1092 = vadd.f32 %v930, %v1091
  %1093 = vmatmul.bf16.gmra.mxu0 %v901
  %v1094 = vpop.f32.mrf.mxu0
  %v1095 = vadd.f32 %v930, %v1094
  %v1096 = vpop.f32.mrf.mxu0
  %v1097 = vadd.f32 %v930, %v1096
  %1098 = vmatmul.bf16.gmra.mxu0 %v902
  %v1099 = vpop.f32.mrf.mxu0
  %v1100 = vadd.f32 %v930, %v1099
  %v1101 = vpop.f32.mrf.mxu0
  %v1102 = vadd.f32 %v930, %v1101
  %1103 = vmatmul.bf16.gmra.mxu0 %v903
  %v1104 = vpop.f32.mrf.mxu0
  %v1105 = vadd.f32 %v930, %v1104
  %v1106 = vpop.f32.mrf.mxu0
  %v1107 = vadd.f32 %v930, %v1106
  %1108 = vmatmul.bf16.gmra.mxu0 %v904
  %v1109 = vpop.f32.mrf.mxu0
  %v1110 = vadd.f32 %v930, %v1109
  %v1111 = vpop.f32.mrf.mxu0
  %v1112 = vadd.f32 %v930, %v1111
  %1113 = vmatmul.bf16.gmra.mxu0 %v905
  %v1114 = vpop.f32.mrf.mxu0
  %v1115 = vadd.f32 %v930, %v1114
  %v1116 = vpop.f32.mrf.mxu0
  %v1117 = vadd.f32 %v930, %v1116
  %1118 = vmatmul.bf16.gmra.mxu0 %v906
  %v1119 = vpop.f32.mrf.mxu0
  %v1120 = vadd.f32 %v930, %v1119
  %v1121 = vpop.f32.mrf.mxu0
  %v1122 = vadd.f32 %v930, %v1121
  %1123 = vmatmul.bf16.gmra.mxu0 %v907
  %v1124 = vpop.f32.mrf.mxu0
  %v1125 = vadd.f32 %v930, %v1124
  %v1126 = vpop.f32.mrf.mxu0
  %v1127 = vadd.f32 %v930, %v1126
  %1128 = vmatmul.bf16.gmra.mxu0 %v908
  %v1129 = vpop.f32.mrf.mxu0
  %v1130 = vadd.f32 %v930, %v1129
  %v1131 = vpop.f32.mrf.mxu0
  %v1132 = vadd.f32 %v930, %v1131
  %1133 = vmatmul.bf16.gmra.mxu0 %v909
  %v1134 = vpop.f32.mrf.mxu0
  %v1135 = vadd.f32 %v930, %v1134
  %v1136 = vpop.f32.mrf.mxu0
  %v1137 = vadd.f32 %v930, %v1136
  %1138 = vmatmul.bf16.gmra.mxu0 %v910
  %v1139 = vpop.f32.mrf.mxu0
  %v1140 = vadd.f32 %v930, %v1139
  %v1141 = vpop.f32.mrf.mxu0
  %v1142 = vadd.f32 %v930, %v1141
  %1143 = vmatmul.bf16.gmra.mxu0 %v911
  %v1144 = vpop.f32.mrf.mxu0
  %v1145 = vadd.f32 %v930, %v1144
  %v1146 = vpop.f32.mrf.mxu0
  %1147 = vdwg.mxu0
  %v1148 = vxor.u32 %v990, 2147483648
  %v1149 = vxor.u32 %v992, 2147483648
  %v1150 = vxor.u32 %v995, 2147483648
  %v1151 = vxor.u32 %v997, 2147483648
  %v1152 = vxor.u32 %v1000, 2147483648
  %v1153 = vxor.u32 %v1002, 2147483648
  %v1154 = vxor.u32 %v1005, 2147483648
  %v1155 = vxor.u32 %v1007, 2147483648
  %v1156 = vxor.u32 %v1010, 2147483648
  %v1157 = vxor.u32 %v1012, 2147483648
  %v1158 = vxor.u32 %v1015, 2147483648
  %v1159 = vxor.u32 %v1017, 2147483648
  %v1160 = vxor.u32 %v1020, 2147483648
  %v1161 = vxor.u32 %v1022, 2147483648
  %v1162 = vxor.u32 %v1025, 2147483648
  %v1163 = vxor.u32 %v1027, 2147483648
  %v1164 = vxor.u32 %v1030, 2147483648
  %v1165 = vxor.u32 %v1032, 2147483648
  %v1166 = vxor.u32 %v1035, 2147483648
  %v1167 = vxor.u32 %v1037, 2147483648
  %v1168 = vxor.u32 %v1040, 2147483648
  %v1169 = vxor.u32 %v1042, 2147483648
  %v1170 = vxor.u32 %v1045, 2147483648
  %v1171 = vxor.u32 %v1047, 2147483648
  %v1172 = vxor.u32 %v1050, 2147483648
  %v1173 = vxor.u32 %v1052, 2147483648
  %v1174 = vxor.u32 %v1055, 2147483648
  %v1175 = vxor.u32 %v1057, 2147483648
  %v1176 = vxor.u32 %v1060, 2147483648
  %v1177 = vxor.u32 %v1062, 2147483648
  %v1178 = vxor.u32 %v1065, 2147483648
  %v1179 = vxor.u32 %v1067, 2147483648
  %v1180 = vxor.u32 %v1070, 2147483648
  %v1181 = vxor.u32 %v1072, 2147483648
  %v1182 = vxor.u32 %v1075, 2147483648
  %v1183 = vxor.u32 %v1077, 2147483648
  %v1184 = vxor.u32 %v1080, 2147483648
  %v1185 = vxor.u32 %v1082, 2147483648
  %v1186 = vxor.u32 %v1085, 2147483648
  %v1187 = vxor.u32 %v1087, 2147483648
  %v1188 = vxor.u32 %v1090, 2147483648
  %v1189 = vxor.u32 %v1092, 2147483648
  %v1190 = vxor.u32 %v1095, 2147483648
  %v1191 = vxor.u32 %v1097, 2147483648
  %v1192 = vxor.u32 %v1100, 2147483648
  %v1193 = vxor.u32 %v1102, 2147483648
  %v1194 = vxor.u32 %v1105, 2147483648
  %v1195 = vxor.u32 %v1107, 2147483648
  %v1196 = vxor.u32 %v1110, 2147483648
  %v1197 = vxor.u32 %v1112, 2147483648
  %v1198 = vxor.u32 %v1115, 2147483648
  %v1199 = vxor.u32 %v1117, 2147483648
  %v1200 = vxor.u32 %v1120, 2147483648
  %v1201 = vxor.u32 %v1122, 2147483648
  %v1202 = vxor.u32 %v1125, 2147483648
  %v1203 = vxor.u32 %v1127, 2147483648
  %v1204 = vxor.u32 %v1130, 2147483648
  %v1205 = vxor.u32 %v1132, 2147483648
  %v1206 = vxor.u32 %v1135, 2147483648
  %v1207 = vxor.u32 %v1137, 2147483648
  %v1208 = vxor.u32 %v1140, 2147483648
  %v1209 = vxor.u32 %v1142, 2147483648
  %v1210 = vxor.u32 %v1145, 2147483648
  %v1211 = vmul.f32 %v1148, 1.442695
  %v1212 = vpow.pop %v1211
  %v1213 = vmul.f32 %v1149, 1.442695
  %v1214 = vpow.pop %v1213
  %v1215 = vmul.f32 %v1150, 1.442695
  %v1216 = vpow.pop %v1215
  %v1217 = vmul.f32 %v1151, 1.442695
  %v1218 = vpow.pop %v1217
  %v1219 = vmul.f32 %v1152, 1.442695
  %v1220 = vpow.pop %v1219
  %v1221 = vmul.f32 %v1153, 1.442695
  %v1222 = vpow.pop %v1221
  %v1223 = vmul.f32 %v1154, 1.442695
  %v1224 = vpow.pop %v1223
  %v1225 = vmul.f32 %v1155, 1.442695
  %v1226 = vpow.pop %v1225
  %v1227 = vmul.f32 %v1156, 1.442695
  %v1228 = vpow.pop %v1227
  %v1229 = vmul.f32 %v1157, 1.442695
  %v1230 = vpow.pop %v1229
  %v1231 = vmul.f32 %v1158, 1.442695
  %v1232 = vpow.pop %v1231
  %v1233 = vmul.f32 %v1159, 1.442695
  %v1234 = vpow.pop %v1233
  %v1235 = vmul.f32 %v1160, 1.442695
  %v1236 = vpow.pop %v1235
  %v1237 = vmul.f32 %v1161, 1.442695
  %v1238 = vpow.pop %v1237
  %v1239 = vmul.f32 %v1162, 1.442695
  %v1240 = vpow.pop %v1239
  %v1241 = vmul.f32 %v1163, 1.442695
  %v1242 = vpow.pop %v1241
  %v1243 = vmul.f32 %v1164, 1.442695
  %v1244 = vpow.pop %v1243
  %v1245 = vmul.f32 %v1165, 1.442695
  %v1246 = vpow.pop %v1245
  %v1247 = vmul.f32 %v1166, 1.442695
  %v1248 = vpow.pop %v1247
  %v1249 = vmul.f32 %v1167, 1.442695
  %v1250 = vpow.pop %v1249
  %v1251 = vmul.f32 %v1168, 1.442695
  %v1252 = vpow.pop %v1251
  %v1253 = vmul.f32 %v1169, 1.442695
  %v1254 = vpow.pop %v1253
  %v1255 = vmul.f32 %v1170, 1.442695
  %v1256 = vpow.pop %v1255
  %v1257 = vmul.f32 %v1171, 1.442695
  %v1258 = vpow.pop %v1257
  %v1259 = vmul.f32 %v1172, 1.442695
  %v1260 = vpow.pop %v1259
  %v1261 = vmul.f32 %v1173, 1.442695
  %v1262 = vpow.pop %v1261
  %v1263 = vmul.f32 %v1174, 1.442695
  %v1264 = vpow.pop %v1263
  %v1265 = vmul.f32 %v1175, 1.442695
  %v1266 = vpow.pop %v1265
  %v1267 = vmul.f32 %v1176, 1.442695
  %v1268 = vpow.pop %v1267
  %v1269 = vmul.f32 %v1177, 1.442695
  %v1270 = vpow.pop %v1269
  %v1271 = vmul.f32 %v1178, 1.442695
  %v1272 = vpow.pop %v1271
  %v1273 = vmul.f32 %v1179, 1.442695
  %v1274 = vpow.pop %v1273
  %v1275 = vmul.f32 %v1180, 1.442695
  %v1276 = vpow.pop %v1275
  %v1277 = vmul.f32 %v1181, 1.442695
  %v1278 = vpow.pop %v1277
  %v1279 = vmul.f32 %v1182, 1.442695
  %v1280 = vpow.pop %v1279
  %v1281 = vmul.f32 %v1183, 1.442695
  %v1282 = vpow.pop %v1281
  %v1283 = vmul.f32 %v1184, 1.442695
  %v1284 = vpow.pop %v1283
  %v1285 = vmul.f32 %v1185, 1.442695
  %v1286 = vpow.pop %v1285
  %v1287 = vmul.f32 %v1186, 1.442695
  %v1288 = vpow.pop %v1287
  %v1289 = vmul.f32 %v1187, 1.442695
  %v1290 = vpow.pop %v1289
  %v1291 = vmul.f32 %v1188, 1.442695
  %v1292 = vpow.pop %v1291
  %v1293 = vmul.f32 %v1189, 1.442695
  %v1294 = vpow.pop %v1293
  %v1295 = vmul.f32 %v1190, 1.442695
  %v1296 = vpow.pop %v1295
  %v1297 = vmul.f32 %v1191, 1.442695
  %v1298 = vpow.pop %v1297
  %v1299 = vmul.f32 %v1192, 1.442695
  %v1300 = vpow.pop %v1299
  %v1301 = vmul.f32 %v1193, 1.442695
  %v1302 = vpow.pop %v1301
  %v1303 = vmul.f32 %v1194, 1.442695
  %v1304 = vpow.pop %v1303
  %v1305 = vmul.f32 %v1195, 1.442695
  %v1306 = vpow.pop %v1305
  %v1307 = vmul.f32 %v1196, 1.442695
  %v1308 = vpow.pop %v1307
  %v1309 = vmul.f32 %v1197, 1.442695
  %v1310 = vpow.pop %v1309
  %v1311 = vmul.f32 %v1198, 1.442695
  %v1312 = vpow.pop %v1311
  %v1313 = vmul.f32 %v1199, 1.442695
  %v1314 = vpow.pop %v1313
  %v1315 = vmul.f32 %v1200, 1.442695
  %v1316 = vpow.pop %v1315
  %v1317 = vmul.f32 %v1201, 1.442695
  %v1318 = vpow.pop %v1317
  %v1319 = vmul.f32 %v1202, 1.442695
  %v1320 = vpow.pop %v1319
  %v1321 = vmul.f32 %v1203, 1.442695
  %v1322 = vpow.pop %v1321
  %v1323 = vmul.f32 %v1204, 1.442695
  %v1324 = vpow.pop %v1323
  %v1325 = vmul.f32 %v1205, 1.442695
  %v1326 = vpow.pop %v1325
  %v1327 = vmul.f32 %v1206, 1.442695
  %v1328 = vpow.pop %v1327
  %v1329 = vmul.f32 %v1207, 1.442695
  %v1330 = vpow.pop %v1329
  %v1331 = vmul.f32 %v1208, 1.442695
  %v1332 = vpow.pop %v1331
  %v1333 = vmul.f32 %v1209, 1.442695
  %v1334 = vpow.pop %v1333
  %v1335 = vmul.f32 %v1210, 1.442695
  %v1336 = vpow.pop %v1335
  %v1337 = vadd.f32 %v1212, 1.0
  %v1338 = vadd.f32 %v1214, 1.0
  %v1339 = vadd.f32 %v1216, 1.0
  %v1340 = vadd.f32 %v1218, 1.0
  %v1341 = vadd.f32 %v1220, 1.0
  %v1342 = vadd.f32 %v1222, 1.0
  %v1343 = vadd.f32 %v1224, 1.0
  %v1344 = vadd.f32 %v1226, 1.0
  %v1345 = vadd.f32 %v1228, 1.0
  %v1346 = vadd.f32 %v1230, 1.0
  %v1347 = vadd.f32 %v1232, 1.0
  %v1348 = vadd.f32 %v1234, 1.0
  %v1349 = vadd.f32 %v1236, 1.0
  %v1350 = vadd.f32 %v1238, 1.0
  %v1351 = vadd.f32 %v1240, 1.0
  %v1352 = vadd.f32 %v1242, 1.0
  %v1353 = vadd.f32 %v1244, 1.0
  %v1354 = vadd.f32 %v1246, 1.0
  %v1355 = vadd.f32 %v1248, 1.0
  %v1356 = vadd.f32 %v1250, 1.0
  %v1357 = vadd.f32 %v1252, 1.0
  %v1358 = vadd.f32 %v1254, 1.0
  %v1359 = vadd.f32 %v1256, 1.0
  %v1360 = vadd.f32 %v1258, 1.0
  %v1361 = vadd.f32 %v1260, 1.0
  %v1362 = vadd.f32 %v1262, 1.0
  %v1363 = vadd.f32 %v1264, 1.0
  %v1364 = vadd.f32 %v1266, 1.0
  %v1365 = vadd.f32 %v1268, 1.0
  %v1366 = vadd.f32 %v1270, 1.0
  %v1367 = vadd.f32 %v1272, 1.0
  %v1368 = vadd.f32 %v1274, 1.0
  %v1369 = vadd.f32 %v1276, 1.0
  %v1370 = vadd.f32 %v1278, 1.0
  %v1371 = vadd.f32 %v1280, 1.0
  %v1372 = vadd.f32 %v1282, 1.0
  %v1373 = vadd.f32 %v1284, 1.0
  %v1374 = vadd.f32 %v1286, 1.0
  %v1375 = vadd.f32 %v1288, 1.0
  %v1376 = vadd.f32 %v1290, 1.0
  %v1377 = vadd.f32 %v1292, 1.0
  %v1378 = vadd.f32 %v1294, 1.0
  %v1379 = vadd.f32 %v1296, 1.0
  %v1380 = vadd.f32 %v1298, 1.0
  %v1381 = vadd.f32 %v1300, 1.0
  %v1382 = vadd.f32 %v1302, 1.0
  %v1383 = vadd.f32 %v1304, 1.0
  %v1384 = vadd.f32 %v1306, 1.0
  %v1385 = vadd.f32 %v1308, 1.0
  %v1386 = vadd.f32 %v1310, 1.0
  %v1387 = vadd.f32 %v1312, 1.0
  %v1388 = vadd.f32 %v1314, 1.0
  %v1389 = vadd.f32 %v1316, 1.0
  %v1390 = vadd.f32 %v1318, 1.0
  %v1391 = vadd.f32 %v1320, 1.0
  %v1392 = vadd.f32 %v1322, 1.0
  %v1393 = vadd.f32 %v1324, 1.0
  %v1394 = vadd.f32 %v1326, 1.0
  %v1395 = vadd.f32 %v1328, 1.0
  %v1396 = vadd.f32 %v1330, 1.0
  %v1397 = vadd.f32 %v1332, 1.0
  %v1398 = vadd.f32 %v1334, 1.0
  %v1399 = vadd.f32 %v1336, 1.0
  %v1400 = vrcp.pop %v1337
  %v1401 = vmul.f32 %v1337, %v1400
  %v1402 = vsub.f32 1.0, %v1401
  %v1403 = vmul.f32 %v1400, %v1402
  %v1404 = vadd.f32 %v1400, %v1403
  %vm1405 = vweird.f32 %v1337
  %vm1406 = vweird.f32 %v1400
  %vm1407 = vmor %vm1405, %vm1406
  %v1408 = vsel %vm1407, %v1400, %v1404
  %v1409 = vand.u32 2147483647, %v1337
  %vm1410 = vcmp.eq.f32.partialorder %v1409, 8.507059e+37
  %v1411 = vand.u32 %v1337, 2147483648
  %v1412 = vor.u32 1.1754944e-38, %v1411
  %v1413 = vsel %vm1410, %v1412, %v1408
  %v1414 = vmul.f32 1.0, %v1413
  %v1415 = vrcp.pop %v1338
  %v1416 = vmul.f32 %v1338, %v1415
  %v1417 = vsub.f32 1.0, %v1416
  %v1418 = vmul.f32 %v1415, %v1417
  %v1419 = vadd.f32 %v1415, %v1418
  %vm1420 = vweird.f32 %v1338
  %vm1421 = vweird.f32 %v1415
  %vm1422 = vmor %vm1420, %vm1421
  %v1423 = vsel %vm1422, %v1415, %v1419
  %v1424 = vand.u32 2147483647, %v1338
  %vm1425 = vcmp.eq.f32.partialorder %v1424, 8.507059e+37
  %v1426 = vand.u32 %v1338, 2147483648
  %v1427 = vor.u32 1.1754944e-38, %v1426
  %v1428 = vsel %vm1425, %v1427, %v1423
  %v1429 = vmul.f32 1.0, %v1428
  %v1430 = vrcp.pop %v1339
  %v1431 = vmul.f32 %v1339, %v1430
  %v1432 = vsub.f32 1.0, %v1431
  %v1433 = vmul.f32 %v1430, %v1432
  %v1434 = vadd.f32 %v1430, %v1433
  %vm1435 = vweird.f32 %v1339
  %vm1436 = vweird.f32 %v1430
  %vm1437 = vmor %vm1435, %vm1436
  %v1438 = vsel %vm1437, %v1430, %v1434
  %v1439 = vand.u32 2147483647, %v1339
  %vm1440 = vcmp.eq.f32.partialorder %v1439, 8.507059e+37
  %v1441 = vand.u32 %v1339, 2147483648
  %v1442 = vor.u32 1.1754944e-38, %v1441
  %v1443 = vsel %vm1440, %v1442, %v1438
  %v1444 = vmul.f32 1.0, %v1443
  %v1445 = vrcp.pop %v1340
  %v1446 = vmul.f32 %v1340, %v1445
  %v1447 = vsub.f32 1.0, %v1446
  %v1448 = vmul.f32 %v1445, %v1447
  %v1449 = vadd.f32 %v1445, %v1448
  %vm1450 = vweird.f32 %v1340
  %vm1451 = vweird.f32 %v1445
  %vm1452 = vmor %vm1450, %vm1451
  %v1453 = vsel %vm1452, %v1445, %v1449
  %v1454 = vand.u32 2147483647, %v1340
  %vm1455 = vcmp.eq.f32.partialorder %v1454, 8.507059e+37
  %v1456 = vand.u32 %v1340, 2147483648
  %v1457 = vor.u32 1.1754944e-38, %v1456
  %v1458 = vsel %vm1455, %v1457, %v1453
  %v1459 = vmul.f32 1.0, %v1458
  %v1460 = vrcp.pop %v1341
  %v1461 = vmul.f32 %v1341, %v1460
  %v1462 = vsub.f32 1.0, %v1461
  %v1463 = vmul.f32 %v1460, %v1462
  %v1464 = vadd.f32 %v1460, %v1463
  %vm1465 = vweird.f32 %v1341
  %vm1466 = vweird.f32 %v1460
  %vm1467 = vmor %vm1465, %vm1466
  %v1468 = vsel %vm1467, %v1460, %v1464
  %v1469 = vand.u32 2147483647, %v1341
  %vm1470 = vcmp.eq.f32.partialorder %v1469, 8.507059e+37
  %v1471 = vand.u32 %v1341, 2147483648
  %v1472 = vor.u32 1.1754944e-38, %v1471
  %v1473 = vsel %vm1470, %v1472, %v1468
  %v1474 = vmul.f32 1.0, %v1473
  %v1475 = vrcp.pop %v1342
  %v1476 = vmul.f32 %v1342, %v1475
  %v1477 = vsub.f32 1.0, %v1476
  %v1478 = vmul.f32 %v1475, %v1477
  %v1479 = vadd.f32 %v1475, %v1478
  %vm1480 = vweird.f32 %v1342
  %vm1481 = vweird.f32 %v1475
  %vm1482 = vmor %vm1480, %vm1481
  %v1483 = vsel %vm1482, %v1475, %v1479
  %v1484 = vand.u32 2147483647, %v1342
  %vm1485 = vcmp.eq.f32.partialorder %v1484, 8.507059e+37
  %v1486 = vand.u32 %v1342, 2147483648
  %v1487 = vor.u32 1.1754944e-38, %v1486
  %v1488 = vsel %vm1485, %v1487, %v1483
  %v1489 = vmul.f32 1.0, %v1488
  %v1490 = vrcp.pop %v1343
  %v1491 = vmul.f32 %v1343, %v1490
  %v1492 = vsub.f32 1.0, %v1491
  %v1493 = vmul.f32 %v1490, %v1492
  %v1494 = vadd.f32 %v1490, %v1493
  %vm1495 = vweird.f32 %v1343
  %vm1496 = vweird.f32 %v1490
  %vm1497 = vmor %vm1495, %vm1496
  %v1498 = vsel %vm1497, %v1490, %v1494
  %v1499 = vand.u32 2147483647, %v1343
  %vm1500 = vcmp.eq.f32.partialorder %v1499, 8.507059e+37
  %v1501 = vand.u32 %v1343, 2147483648
  %v1502 = vor.u32 1.1754944e-38, %v1501
  %v1503 = vsel %vm1500, %v1502, %v1498
  %v1504 = vmul.f32 1.0, %v1503
  %v1505 = vrcp.pop %v1344
  %v1506 = vmul.f32 %v1344, %v1505
  %v1507 = vsub.f32 1.0, %v1506
  %v1508 = vmul.f32 %v1505, %v1507
  %v1509 = vadd.f32 %v1505, %v1508
  %vm1510 = vweird.f32 %v1344
  %vm1511 = vweird.f32 %v1505
  %vm1512 = vmor %vm1510, %vm1511
  %v1513 = vsel %vm1512, %v1505, %v1509
  %v1514 = vand.u32 2147483647, %v1344
  %vm1515 = vcmp.eq.f32.partialorder %v1514, 8.507059e+37
  %v1516 = vand.u32 %v1344, 2147483648
  %v1517 = vor.u32 1.1754944e-38, %v1516
  %v1518 = vsel %vm1515, %v1517, %v1513
  %v1519 = vmul.f32 1.0, %v1518
  %v1520 = vrcp.pop %v1345
  %v1521 = vmul.f32 %v1345, %v1520
  %v1522 = vsub.f32 1.0, %v1521
  %v1523 = vmul.f32 %v1520, %v1522
  %v1524 = vadd.f32 %v1520, %v1523
  %vm1525 = vweird.f32 %v1345
  %vm1526 = vweird.f32 %v1520
  %vm1527 = vmor %vm1525, %vm1526
  %v1528 = vsel %vm1527, %v1520, %v1524
  %v1529 = vand.u32 2147483647, %v1345
  %vm1530 = vcmp.eq.f32.partialorder %v1529, 8.507059e+37
  %v1531 = vand.u32 %v1345, 2147483648
  %v1532 = vor.u32 1.1754944e-38, %v1531
  %v1533 = vsel %vm1530, %v1532, %v1528
  %v1534 = vmul.f32 1.0, %v1533
  %v1535 = vrcp.pop %v1346
  %v1536 = vmul.f32 %v1346, %v1535
  %v1537 = vsub.f32 1.0, %v1536
  %v1538 = vmul.f32 %v1535, %v1537
  %v1539 = vadd.f32 %v1535, %v1538
  %vm1540 = vweird.f32 %v1346
  %vm1541 = vweird.f32 %v1535
  %vm1542 = vmor %vm1540, %vm1541
  %v1543 = vsel %vm1542, %v1535, %v1539
  %v1544 = vand.u32 2147483647, %v1346
  %vm1545 = vcmp.eq.f32.partialorder %v1544, 8.507059e+37
  %v1546 = vand.u32 %v1346, 2147483648
  %v1547 = vor.u32 1.1754944e-38, %v1546
  %v1548 = vsel %vm1545, %v1547, %v1543
  %v1549 = vmul.f32 1.0, %v1548
  %v1550 = vrcp.pop %v1347
  %v1551 = vmul.f32 %v1347, %v1550
  %v1552 = vsub.f32 1.0, %v1551
  %v1553 = vmul.f32 %v1550, %v1552
  %v1554 = vadd.f32 %v1550, %v1553
  %vm1555 = vweird.f32 %v1347
  %vm1556 = vweird.f32 %v1550
  %vm1557 = vmor %vm1555, %vm1556
  %v1558 = vsel %vm1557, %v1550, %v1554
  %v1559 = vand.u32 2147483647, %v1347
  %vm1560 = vcmp.eq.f32.partialorder %v1559, 8.507059e+37
  %v1561 = vand.u32 %v1347, 2147483648
  %v1562 = vor.u32 1.1754944e-38, %v1561
  %v1563 = vsel %vm1560, %v1562, %v1558
  %v1564 = vmul.f32 1.0, %v1563
  %v1565 = vrcp.pop %v1348
  %v1566 = vmul.f32 %v1348, %v1565
  %v1567 = vsub.f32 1.0, %v1566
  %v1568 = vmul.f32 %v1565, %v1567
  %v1569 = vadd.f32 %v1565, %v1568
  %vm1570 = vweird.f32 %v1348
  %vm1571 = vweird.f32 %v1565
  %vm1572 = vmor %vm1570, %vm1571
  %v1573 = vsel %vm1572, %v1565, %v1569
  %v1574 = vand.u32 2147483647, %v1348
  %vm1575 = vcmp.eq.f32.partialorder %v1574, 8.507059e+37
  %v1576 = vand.u32 %v1348, 2147483648
  %v1577 = vor.u32 1.1754944e-38, %v1576
  %v1578 = vsel %vm1575, %v1577, %v1573
  %v1579 = vmul.f32 1.0, %v1578
  %v1580 = vrcp.pop %v1349
  %v1581 = vmul.f32 %v1349, %v1580
  %v1582 = vsub.f32 1.0, %v1581
  %v1583 = vmul.f32 %v1580, %v1582
  %v1584 = vadd.f32 %v1580, %v1583
  %vm1585 = vweird.f32 %v1349
  %vm1586 = vweird.f32 %v1580
  %vm1587 = vmor %vm1585, %vm1586
  %v1588 = vsel %vm1587, %v1580, %v1584
  %v1589 = vand.u32 2147483647, %v1349
  %vm1590 = vcmp.eq.f32.partialorder %v1589, 8.507059e+37
  %v1591 = vand.u32 %v1349, 2147483648
  %v1592 = vor.u32 1.1754944e-38, %v1591
  %v1593 = vsel %vm1590, %v1592, %v1588
  %v1594 = vmul.f32 1.0, %v1593
  %v1595 = vrcp.pop %v1350
  %v1596 = vmul.f32 %v1350, %v1595
  %v1597 = vsub.f32 1.0, %v1596
  %v1598 = vmul.f32 %v1595, %v1597
  %v1599 = vadd.f32 %v1595, %v1598
  %vm1600 = vweird.f32 %v1350
  %vm1601 = vweird.f32 %v1595
  %vm1602 = vmor %vm1600, %vm1601
  %v1603 = vsel %vm1602, %v1595, %v1599
  %v1604 = vand.u32 2147483647, %v1350
  %vm1605 = vcmp.eq.f32.partialorder %v1604, 8.507059e+37
  %v1606 = vand.u32 %v1350, 2147483648
  %v1607 = vor.u32 1.1754944e-38, %v1606
  %v1608 = vsel %vm1605, %v1607, %v1603
  %v1609 = vmul.f32 1.0, %v1608
  %v1610 = vrcp.pop %v1351
  %v1611 = vmul.f32 %v1351, %v1610
  %v1612 = vsub.f32 1.0, %v1611
  %v1613 = vmul.f32 %v1610, %v1612
  %v1614 = vadd.f32 %v1610, %v1613
  %vm1615 = vweird.f32 %v1351
  %vm1616 = vweird.f32 %v1610
  %vm1617 = vmor %vm1615, %vm1616
  %v1618 = vsel %vm1617, %v1610, %v1614
  %v1619 = vand.u32 2147483647, %v1351
  %vm1620 = vcmp.eq.f32.partialorder %v1619, 8.507059e+37
  %v1621 = vand.u32 %v1351, 2147483648
  %v1622 = vor.u32 1.1754944e-38, %v1621
  %v1623 = vsel %vm1620, %v1622, %v1618
  %v1624 = vmul.f32 1.0, %v1623
  %v1625 = vrcp.pop %v1352
  %v1626 = vmul.f32 %v1352, %v1625
  %v1627 = vsub.f32 1.0, %v1626
  %v1628 = vmul.f32 %v1625, %v1627
  %v1629 = vadd.f32 %v1625, %v1628
  %vm1630 = vweird.f32 %v1352
  %vm1631 = vweird.f32 %v1625
  %vm1632 = vmor %vm1630, %vm1631
  %v1633 = vsel %vm1632, %v1625, %v1629
  %v1634 = vand.u32 2147483647, %v1352
  %vm1635 = vcmp.eq.f32.partialorder %v1634, 8.507059e+37
  %v1636 = vand.u32 %v1352, 2147483648
  %v1637 = vor.u32 1.1754944e-38, %v1636
  %v1638 = vsel %vm1635, %v1637, %v1633
  %v1639 = vmul.f32 1.0, %v1638
  %v1640 = vrcp.pop %v1353
  %v1641 = vmul.f32 %v1353, %v1640
  %v1642 = vsub.f32 1.0, %v1641
  %v1643 = vmul.f32 %v1640, %v1642
  %v1644 = vadd.f32 %v1640, %v1643
  %vm1645 = vweird.f32 %v1353
  %vm1646 = vweird.f32 %v1640
  %vm1647 = vmor %vm1645, %vm1646
  %v1648 = vsel %vm1647, %v1640, %v1644
  %v1649 = vand.u32 2147483647, %v1353
  %vm1650 = vcmp.eq.f32.partialorder %v1649, 8.507059e+37
  %v1651 = vand.u32 %v1353, 2147483648
  %v1652 = vor.u32 1.1754944e-38, %v1651
  %v1653 = vsel %vm1650, %v1652, %v1648
  %v1654 = vmul.f32 1.0, %v1653
  %v1655 = vrcp.pop %v1354
  %v1656 = vmul.f32 %v1354, %v1655
  %v1657 = vsub.f32 1.0, %v1656
  %v1658 = vmul.f32 %v1655, %v1657
  %v1659 = vadd.f32 %v1655, %v1658
  %vm1660 = vweird.f32 %v1354
  %vm1661 = vweird.f32 %v1655
  %vm1662 = vmor %vm1660, %vm1661
  %v1663 = vsel %vm1662, %v1655, %v1659
  %v1664 = vand.u32 2147483647, %v1354
  %vm1665 = vcmp.eq.f32.partialorder %v1664, 8.507059e+37
  %v1666 = vand.u32 %v1354, 2147483648
  %v1667 = vor.u32 1.1754944e-38, %v1666
  %v1668 = vsel %vm1665, %v1667, %v1663
  %v1669 = vmul.f32 1.0, %v1668
  %v1670 = vrcp.pop %v1355
  %v1671 = vmul.f32 %v1355, %v1670
  %v1672 = vsub.f32 1.0, %v1671
  %v1673 = vmul.f32 %v1670, %v1672
  %v1674 = vadd.f32 %v1670, %v1673
  %vm1675 = vweird.f32 %v1355
  %vm1676 = vweird.f32 %v1670
  %vm1677 = vmor %vm1675, %vm1676
  %v1678 = vsel %vm1677, %v1670, %v1674
  %v1679 = vand.u32 2147483647, %v1355
  %vm1680 = vcmp.eq.f32.partialorder %v1679, 8.507059e+37
  %v1681 = vand.u32 %v1355, 2147483648
  %v1682 = vor.u32 1.1754944e-38, %v1681
  %v1683 = vsel %vm1680, %v1682, %v1678
  %v1684 = vmul.f32 1.0, %v1683
  %v1685 = vrcp.pop %v1356
  %v1686 = vmul.f32 %v1356, %v1685
  %v1687 = vsub.f32 1.0, %v1686
  %v1688 = vmul.f32 %v1685, %v1687
  %v1689 = vadd.f32 %v1685, %v1688
  %vm1690 = vweird.f32 %v1356
  %vm1691 = vweird.f32 %v1685
  %vm1692 = vmor %vm1690, %vm1691
  %v1693 = vsel %vm1692, %v1685, %v1689
  %v1694 = vand.u32 2147483647, %v1356
  %vm1695 = vcmp.eq.f32.partialorder %v1694, 8.507059e+37
  %v1696 = vand.u32 %v1356, 2147483648
  %v1697 = vor.u32 1.1754944e-38, %v1696
  %v1698 = vsel %vm1695, %v1697, %v1693
  %v1699 = vmul.f32 1.0, %v1698
  %v1700 = vrcp.pop %v1357
  %v1701 = vmul.f32 %v1357, %v1700
  %v1702 = vsub.f32 1.0, %v1701
  %v1703 = vmul.f32 %v1700, %v1702
  %v1704 = vadd.f32 %v1700, %v1703
  %vm1705 = vweird.f32 %v1357
  %vm1706 = vweird.f32 %v1700
  %vm1707 = vmor %vm1705, %vm1706
  %v1708 = vsel %vm1707, %v1700, %v1704
  %v1709 = vand.u32 2147483647, %v1357
  %vm1710 = vcmp.eq.f32.partialorder %v1709, 8.507059e+37
  %v1711 = vand.u32 %v1357, 2147483648
  %v1712 = vor.u32 1.1754944e-38, %v1711
  %v1713 = vsel %vm1710, %v1712, %v1708
  %v1714 = vmul.f32 1.0, %v1713
  %v1715 = vrcp.pop %v1358
  %v1716 = vmul.f32 %v1358, %v1715
  %v1717 = vsub.f32 1.0, %v1716
  %v1718 = vmul.f32 %v1715, %v1717
  %v1719 = vadd.f32 %v1715, %v1718
  %vm1720 = vweird.f32 %v1358
  %vm1721 = vweird.f32 %v1715
  %vm1722 = vmor %vm1720, %vm1721
  %v1723 = vsel %vm1722, %v1715, %v1719
  %v1724 = vand.u32 2147483647, %v1358
  %vm1725 = vcmp.eq.f32.partialorder %v1724, 8.507059e+37
  %v1726 = vand.u32 %v1358, 2147483648
  %v1727 = vor.u32 1.1754944e-38, %v1726
  %v1728 = vsel %vm1725, %v1727, %v1723
  %v1729 = vmul.f32 1.0, %v1728
  %v1730 = vrcp.pop %v1359
  %v1731 = vmul.f32 %v1359, %v1730
  %v1732 = vsub.f32 1.0, %v1731
  %v1733 = vmul.f32 %v1730, %v1732
  %v1734 = vadd.f32 %v1730, %v1733
  %vm1735 = vweird.f32 %v1359
  %vm1736 = vweird.f32 %v1730
  %vm1737 = vmor %vm1735, %vm1736
  %v1738 = vsel %vm1737, %v1730, %v1734
  %v1739 = vand.u32 2147483647, %v1359
  %vm1740 = vcmp.eq.f32.partialorder %v1739, 8.507059e+37
  %v1741 = vand.u32 %v1359, 2147483648
  %v1742 = vor.u32 1.1754944e-38, %v1741
  %v1743 = vsel %vm1740, %v1742, %v1738
  %v1744 = vmul.f32 1.0, %v1743
  %v1745 = vrcp.pop %v1360
  %v1746 = vmul.f32 %v1360, %v1745
  %v1747 = vsub.f32 1.0, %v1746
  %v1748 = vmul.f32 %v1745, %v1747
  %v1749 = vadd.f32 %v1745, %v1748
  %vm1750 = vweird.f32 %v1360
  %vm1751 = vweird.f32 %v1745
  %vm1752 = vmor %vm1750, %vm1751
  %v1753 = vsel %vm1752, %v1745, %v1749
  %v1754 = vand.u32 2147483647, %v1360
  %vm1755 = vcmp.eq.f32.partialorder %v1754, 8.507059e+37
  %v1756 = vand.u32 %v1360, 2147483648
  %v1757 = vor.u32 1.1754944e-38, %v1756
  %v1758 = vsel %vm1755, %v1757, %v1753
  %v1759 = vmul.f32 1.0, %v1758
  %v1760 = vrcp.pop %v1361
  %v1761 = vmul.f32 %v1361, %v1760
  %v1762 = vsub.f32 1.0, %v1761
  %v1763 = vmul.f32 %v1760, %v1762
  %v1764 = vadd.f32 %v1760, %v1763
  %vm1765 = vweird.f32 %v1361
  %vm1766 = vweird.f32 %v1760
  %vm1767 = vmor %vm1765, %vm1766
  %v1768 = vsel %vm1767, %v1760, %v1764
  %v1769 = vand.u32 2147483647, %v1361
  %vm1770 = vcmp.eq.f32.partialorder %v1769, 8.507059e+37
  %v1771 = vand.u32 %v1361, 2147483648
  %v1772 = vor.u32 1.1754944e-38, %v1771
  %v1773 = vsel %vm1770, %v1772, %v1768
  %v1774 = vmul.f32 1.0, %v1773
  %v1775 = vrcp.pop %v1362
  %v1776 = vmul.f32 %v1362, %v1775
  %v1777 = vsub.f32 1.0, %v1776
  %v1778 = vmul.f32 %v1775, %v1777
  %v1779 = vadd.f32 %v1775, %v1778
  %vm1780 = vweird.f32 %v1362
  %vm1781 = vweird.f32 %v1775
  %vm1782 = vmor %vm1780, %vm1781
  %v1783 = vsel %vm1782, %v1775, %v1779
  %v1784 = vand.u32 2147483647, %v1362
  %vm1785 = vcmp.eq.f32.partialorder %v1784, 8.507059e+37
  %v1786 = vand.u32 %v1362, 2147483648
  %v1787 = vor.u32 1.1754944e-38, %v1786
  %v1788 = vsel %vm1785, %v1787, %v1783
  %v1789 = vmul.f32 1.0, %v1788
  %v1790 = vrcp.pop %v1363
  %v1791 = vmul.f32 %v1363, %v1790
  %v1792 = vsub.f32 1.0, %v1791
  %v1793 = vmul.f32 %v1790, %v1792
  %v1794 = vadd.f32 %v1790, %v1793
  %vm1795 = vweird.f32 %v1363
  %vm1796 = vweird.f32 %v1790
  %vm1797 = vmor %vm1795, %vm1796
  %v1798 = vsel %vm1797, %v1790, %v1794
  %v1799 = vand.u32 2147483647, %v1363
  %vm1800 = vcmp.eq.f32.partialorder %v1799, 8.507059e+37
  %v1801 = vand.u32 %v1363, 2147483648
  %v1802 = vor.u32 1.1754944e-38, %v1801
  %v1803 = vsel %vm1800, %v1802, %v1798
  %v1804 = vmul.f32 1.0, %v1803
  %v1805 = vrcp.pop %v1364
  %v1806 = vmul.f32 %v1364, %v1805
  %v1807 = vsub.f32 1.0, %v1806
  %v1808 = vmul.f32 %v1805, %v1807
  %v1809 = vadd.f32 %v1805, %v1808
  %vm1810 = vweird.f32 %v1364
  %vm1811 = vweird.f32 %v1805
  %vm1812 = vmor %vm1810, %vm1811
  %v1813 = vsel %vm1812, %v1805, %v1809
  %v1814 = vand.u32 2147483647, %v1364
  %vm1815 = vcmp.eq.f32.partialorder %v1814, 8.507059e+37
  %v1816 = vand.u32 %v1364, 2147483648
  %v1817 = vor.u32 1.1754944e-38, %v1816
  %v1818 = vsel %vm1815, %v1817, %v1813
  %v1819 = vmul.f32 1.0, %v1818
  %v1820 = vrcp.pop %v1365
  %v1821 = vmul.f32 %v1365, %v1820
  %v1822 = vsub.f32 1.0, %v1821
  %v1823 = vmul.f32 %v1820, %v1822
  %v1824 = vadd.f32 %v1820, %v1823
  %vm1825 = vweird.f32 %v1365
  %vm1826 = vweird.f32 %v1820
  %vm1827 = vmor %vm1825, %vm1826
  %v1828 = vsel %vm1827, %v1820, %v1824
  %v1829 = vand.u32 2147483647, %v1365
  %vm1830 = vcmp.eq.f32.partialorder %v1829, 8.507059e+37
  %v1831 = vand.u32 %v1365, 2147483648
  %v1832 = vor.u32 1.1754944e-38, %v1831
  %v1833 = vsel %vm1830, %v1832, %v1828
  %v1834 = vmul.f32 1.0, %v1833
  %v1835 = vrcp.pop %v1366
  %v1836 = vmul.f32 %v1366, %v1835
  %v1837 = vsub.f32 1.0, %v1836
  %v1838 = vmul.f32 %v1835, %v1837
  %v1839 = vadd.f32 %v1835, %v1838
  %vm1840 = vweird.f32 %v1366
  %vm1841 = vweird.f32 %v1835
  %vm1842 = vmor %vm1840, %vm1841
  %v1843 = vsel %vm1842, %v1835, %v1839
  %v1844 = vand.u32 2147483647, %v1366
  %vm1845 = vcmp.eq.f32.partialorder %v1844, 8.507059e+37
  %v1846 = vand.u32 %v1366, 2147483648
  %v1847 = vor.u32 1.1754944e-38, %v1846
  %v1848 = vsel %vm1845, %v1847, %v1843
  %v1849 = vmul.f32 1.0, %v1848
  %v1850 = vrcp.pop %v1367
  %v1851 = vmul.f32 %v1367, %v1850
  %v1852 = vsub.f32 1.0, %v1851
  %v1853 = vmul.f32 %v1850, %v1852
  %v1854 = vadd.f32 %v1850, %v1853
  %vm1855 = vweird.f32 %v1367
  %vm1856 = vweird.f32 %v1850
  %vm1857 = vmor %vm1855, %vm1856
  %v1858 = vsel %vm1857, %v1850, %v1854
  %v1859 = vand.u32 2147483647, %v1367
  %vm1860 = vcmp.eq.f32.partialorder %v1859, 8.507059e+37
  %v1861 = vand.u32 %v1367, 2147483648
  %v1862 = vor.u32 1.1754944e-38, %v1861
  %v1863 = vsel %vm1860, %v1862, %v1858
  %v1864 = vmul.f32 1.0, %v1863
  %v1865 = vrcp.pop %v1368
  %v1866 = vmul.f32 %v1368, %v1865
  %v1867 = vsub.f32 1.0, %v1866
  %v1868 = vmul.f32 %v1865, %v1867
  %v1869 = vadd.f32 %v1865, %v1868
  %vm1870 = vweird.f32 %v1368
  %vm1871 = vweird.f32 %v1865
  %vm1872 = vmor %vm1870, %vm1871
  %v1873 = vsel %vm1872, %v1865, %v1869
  %v1874 = vand.u32 2147483647, %v1368
  %vm1875 = vcmp.eq.f32.partialorder %v1874, 8.507059e+37
  %v1876 = vand.u32 %v1368, 2147483648
  %v1877 = vor.u32 1.1754944e-38, %v1876
  %v1878 = vsel %vm1875, %v1877, %v1873
  %v1879 = vmul.f32 1.0, %v1878
  %v1880 = vrcp.pop %v1369
  %v1881 = vmul.f32 %v1369, %v1880
  %v1882 = vsub.f32 1.0, %v1881
  %v1883 = vmul.f32 %v1880, %v1882
  %v1884 = vadd.f32 %v1880, %v1883
  %vm1885 = vweird.f32 %v1369
  %vm1886 = vweird.f32 %v1880
  %vm1887 = vmor %vm1885, %vm1886
  %v1888 = vsel %vm1887, %v1880, %v1884
  %v1889 = vand.u32 2147483647, %v1369
  %vm1890 = vcmp.eq.f32.partialorder %v1889, 8.507059e+37
  %v1891 = vand.u32 %v1369, 2147483648
  %v1892 = vor.u32 1.1754944e-38, %v1891
  %v1893 = vsel %vm1890, %v1892, %v1888
  %v1894 = vmul.f32 1.0, %v1893
  %v1895 = vrcp.pop %v1370
  %v1896 = vmul.f32 %v1370, %v1895
  %v1897 = vsub.f32 1.0, %v1896
  %v1898 = vmul.f32 %v1895, %v1897
  %v1899 = vadd.f32 %v1895, %v1898
  %vm1900 = vweird.f32 %v1370
  %vm1901 = vweird.f32 %v1895
  %vm1902 = vmor %vm1900, %vm1901
  %v1903 = vsel %vm1902, %v1895, %v1899
  %v1904 = vand.u32 2147483647, %v1370
  %vm1905 = vcmp.eq.f32.partialorder %v1904, 8.507059e+37
  %v1906 = vand.u32 %v1370, 2147483648
  %v1907 = vor.u32 1.1754944e-38, %v1906
  %v1908 = vsel %vm1905, %v1907, %v1903
  %v1909 = vmul.f32 1.0, %v1908
  %v1910 = vrcp.pop %v1371
  %v1911 = vmul.f32 %v1371, %v1910
  %v1912 = vsub.f32 1.0, %v1911
  %v1913 = vmul.f32 %v1910, %v1912
  %v1914 = vadd.f32 %v1910, %v1913
  %vm1915 = vweird.f32 %v1371
  %vm1916 = vweird.f32 %v1910
  %vm1917 = vmor %vm1915, %vm1916
  %v1918 = vsel %vm1917, %v1910, %v1914
  %v1919 = vand.u32 2147483647, %v1371
  %vm1920 = vcmp.eq.f32.partialorder %v1919, 8.507059e+37
  %v1921 = vand.u32 %v1371, 2147483648
  %v1922 = vor.u32 1.1754944e-38, %v1921
  %v1923 = vsel %vm1920, %v1922, %v1918
  %v1924 = vmul.f32 1.0, %v1923
  %v1925 = vrcp.pop %v1372
  %v1926 = vmul.f32 %v1372, %v1925
  %v1927 = vsub.f32 1.0, %v1926
  %v1928 = vmul.f32 %v1925, %v1927
  %v1929 = vadd.f32 %v1925, %v1928
  %vm1930 = vweird.f32 %v1372
  %vm1931 = vweird.f32 %v1925
  %vm1932 = vmor %vm1930, %vm1931
  %v1933 = vsel %vm1932, %v1925, %v1929
  %v1934 = vand.u32 2147483647, %v1372
  %vm1935 = vcmp.eq.f32.partialorder %v1934, 8.507059e+37
  %v1936 = vand.u32 %v1372, 2147483648
  %v1937 = vor.u32 1.1754944e-38, %v1936
  %v1938 = vsel %vm1935, %v1937, %v1933
  %v1939 = vmul.f32 1.0, %v1938
  %v1940 = vrcp.pop %v1373
  %v1941 = vmul.f32 %v1373, %v1940
  %v1942 = vsub.f32 1.0, %v1941
  %v1943 = vmul.f32 %v1940, %v1942
  %v1944 = vadd.f32 %v1940, %v1943
  %vm1945 = vweird.f32 %v1373
  %vm1946 = vweird.f32 %v1940
  %vm1947 = vmor %vm1945, %vm1946
  %v1948 = vsel %vm1947, %v1940, %v1944
  %v1949 = vand.u32 2147483647, %v1373
  %vm1950 = vcmp.eq.f32.partialorder %v1949, 8.507059e+37
  %v1951 = vand.u32 %v1373, 2147483648
  %v1952 = vor.u32 1.1754944e-38, %v1951
  %v1953 = vsel %vm1950, %v1952, %v1948
  %v1954 = vmul.f32 1.0, %v1953
  %v1955 = vrcp.pop %v1374
  %v1956 = vmul.f32 %v1374, %v1955
  %v1957 = vsub.f32 1.0, %v1956
  %v1958 = vmul.f32 %v1955, %v1957
  %v1959 = vadd.f32 %v1955, %v1958
  %vm1960 = vweird.f32 %v1374
  %vm1961 = vweird.f32 %v1955
  %vm1962 = vmor %vm1960, %vm1961
  %v1963 = vsel %vm1962, %v1955, %v1959
  %v1964 = vand.u32 2147483647, %v1374
  %vm1965 = vcmp.eq.f32.partialorder %v1964, 8.507059e+37
  %v1966 = vand.u32 %v1374, 2147483648
  %v1967 = vor.u32 1.1754944e-38, %v1966
  %v1968 = vsel %vm1965, %v1967, %v1963
  %v1969 = vmul.f32 1.0, %v1968
  %v1970 = vrcp.pop %v1375
  %v1971 = vmul.f32 %v1375, %v1970
  %v1972 = vsub.f32 1.0, %v1971
  %v1973 = vmul.f32 %v1970, %v1972
  %v1974 = vadd.f32 %v1970, %v1973
  %vm1975 = vweird.f32 %v1375
  %vm1976 = vweird.f32 %v1970
  %vm1977 = vmor %vm1975, %vm1976
  %v1978 = vsel %vm1977, %v1970, %v1974
  %v1979 = vand.u32 2147483647, %v1375
  %vm1980 = vcmp.eq.f32.partialorder %v1979, 8.507059e+37
  %v1981 = vand.u32 %v1375, 2147483648
  %v1982 = vor.u32 1.1754944e-38, %v1981
  %v1983 = vsel %vm1980, %v1982, %v1978
  %v1984 = vmul.f32 1.0, %v1983
  %v1985 = vrcp.pop %v1376
  %v1986 = vmul.f32 %v1376, %v1985
  %v1987 = vsub.f32 1.0, %v1986
  %v1988 = vmul.f32 %v1985, %v1987
  %v1989 = vadd.f32 %v1985, %v1988
  %vm1990 = vweird.f32 %v1376
  %vm1991 = vweird.f32 %v1985
  %vm1992 = vmor %vm1990, %vm1991
  %v1993 = vsel %vm1992, %v1985, %v1989
  %v1994 = vand.u32 2147483647, %v1376
  %vm1995 = vcmp.eq.f32.partialorder %v1994, 8.507059e+37
  %v1996 = vand.u32 %v1376, 2147483648
  %v1997 = vor.u32 1.1754944e-38, %v1996
  %v1998 = vsel %vm1995, %v1997, %v1993
  %v1999 = vmul.f32 1.0, %v1998
  %v2000 = vrcp.pop %v1377
  %v2001 = vmul.f32 %v1377, %v2000
  %v2002 = vsub.f32 1.0, %v2001
  %v2003 = vmul.f32 %v2000, %v2002
  %v2004 = vadd.f32 %v2000, %v2003
  %vm2005 = vweird.f32 %v1377
  %vm2006 = vweird.f32 %v2000
  %vm2007 = vmor %vm2005, %vm2006
  %v2008 = vsel %vm2007, %v2000, %v2004
  %v2009 = vand.u32 2147483647, %v1377
  %vm2010 = vcmp.eq.f32.partialorder %v2009, 8.507059e+37
  %v2011 = vand.u32 %v1377, 2147483648
  %v2012 = vor.u32 1.1754944e-38, %v2011
  %v2013 = vsel %vm2010, %v2012, %v2008
  %v2014 = vmul.f32 1.0, %v2013
  %v2015 = vrcp.pop %v1378
  %v2016 = vmul.f32 %v1378, %v2015
  %v2017 = vsub.f32 1.0, %v2016
  %v2018 = vmul.f32 %v2015, %v2017
  %v2019 = vadd.f32 %v2015, %v2018
  %vm2020 = vweird.f32 %v1378
  %vm2021 = vweird.f32 %v2015
  %vm2022 = vmor %vm2020, %vm2021
  %v2023 = vsel %vm2022, %v2015, %v2019
  %v2024 = vand.u32 2147483647, %v1378
  %vm2025 = vcmp.eq.f32.partialorder %v2024, 8.507059e+37
  %v2026 = vand.u32 %v1378, 2147483648
  %v2027 = vor.u32 1.1754944e-38, %v2026
  %v2028 = vsel %vm2025, %v2027, %v2023
  %v2029 = vmul.f32 1.0, %v2028
  %v2030 = vrcp.pop %v1379
  %v2031 = vmul.f32 %v1379, %v2030
  %v2032 = vsub.f32 1.0, %v2031
  %v2033 = vmul.f32 %v2030, %v2032
  %v2034 = vadd.f32 %v2030, %v2033
  %vm2035 = vweird.f32 %v1379
  %vm2036 = vweird.f32 %v2030
  %vm2037 = vmor %vm2035, %vm2036
  %v2038 = vsel %vm2037, %v2030, %v2034
  %v2039 = vand.u32 2147483647, %v1379
  %vm2040 = vcmp.eq.f32.partialorder %v2039, 8.507059e+37
  %v2041 = vand.u32 %v1379, 2147483648
  %v2042 = vor.u32 1.1754944e-38, %v2041
  %v2043 = vsel %vm2040, %v2042, %v2038
  %v2044 = vmul.f32 1.0, %v2043
  %v2045 = vrcp.pop %v1380
  %v2046 = vmul.f32 %v1380, %v2045
  %v2047 = vsub.f32 1.0, %v2046
  %v2048 = vmul.f32 %v2045, %v2047
  %v2049 = vadd.f32 %v2045, %v2048
  %vm2050 = vweird.f32 %v1380
  %vm2051 = vweird.f32 %v2045
  %vm2052 = vmor %vm2050, %vm2051
  %v2053 = vsel %vm2052, %v2045, %v2049
  %v2054 = vand.u32 2147483647, %v1380
  %vm2055 = vcmp.eq.f32.partialorder %v2054, 8.507059e+37
  %v2056 = vand.u32 %v1380, 2147483648
  %v2057 = vor.u32 1.1754944e-38, %v2056
  %v2058 = vsel %vm2055, %v2057, %v2053
  %v2059 = vmul.f32 1.0, %v2058
  %v2060 = vrcp.pop %v1381
  %v2061 = vmul.f32 %v1381, %v2060
  %v2062 = vsub.f32 1.0, %v2061
  %v2063 = vmul.f32 %v2060, %v2062
  %v2064 = vadd.f32 %v2060, %v2063
  %vm2065 = vweird.f32 %v1381
  %vm2066 = vweird.f32 %v2060
  %vm2067 = vmor %vm2065, %vm2066
  %v2068 = vsel %vm2067, %v2060, %v2064
  %v2069 = vand.u32 2147483647, %v1381
  %vm2070 = vcmp.eq.f32.partialorder %v2069, 8.507059e+37
  %v2071 = vand.u32 %v1381, 2147483648
  %v2072 = vor.u32 1.1754944e-38, %v2071
  %v2073 = vsel %vm2070, %v2072, %v2068
  %v2074 = vmul.f32 1.0, %v2073
  %v2075 = vrcp.pop %v1382
  %v2076 = vmul.f32 %v1382, %v2075
  %v2077 = vsub.f32 1.0, %v2076
  %v2078 = vmul.f32 %v2075, %v2077
  %v2079 = vadd.f32 %v2075, %v2078
  %vm2080 = vweird.f32 %v1382
  %vm2081 = vweird.f32 %v2075
  %vm2082 = vmor %vm2080, %vm2081
  %v2083 = vsel %vm2082, %v2075, %v2079
  %v2084 = vand.u32 2147483647, %v1382
  %vm2085 = vcmp.eq.f32.partialorder %v2084, 8.507059e+37
  %v2086 = vand.u32 %v1382, 2147483648
  %v2087 = vor.u32 1.1754944e-38, %v2086
  %v2088 = vsel %vm2085, %v2087, %v2083
  %v2089 = vmul.f32 1.0, %v2088
  %v2090 = vrcp.pop %v1383
  %v2091 = vmul.f32 %v1383, %v2090
  %v2092 = vsub.f32 1.0, %v2091
  %v2093 = vmul.f32 %v2090, %v2092
  %v2094 = vadd.f32 %v2090, %v2093
  %vm2095 = vweird.f32 %v1383
  %vm2096 = vweird.f32 %v2090
  %vm2097 = vmor %vm2095, %vm2096
  %v2098 = vsel %vm2097, %v2090, %v2094
  %v2099 = vand.u32 2147483647, %v1383
  %vm2100 = vcmp.eq.f32.partialorder %v2099, 8.507059e+37
  %v2101 = vand.u32 %v1383, 2147483648
  %v2102 = vor.u32 1.1754944e-38, %v2101
  %v2103 = vsel %vm2100, %v2102, %v2098
  %v2104 = vmul.f32 1.0, %v2103
  %v2105 = vrcp.pop %v1384
  %v2106 = vmul.f32 %v1384, %v2105
  %v2107 = vsub.f32 1.0, %v2106
  %v2108 = vmul.f32 %v2105, %v2107
  %v2109 = vadd.f32 %v2105, %v2108
  %vm2110 = vweird.f32 %v1384
  %vm2111 = vweird.f32 %v2105
  %vm2112 = vmor %vm2110, %vm2111
  %v2113 = vsel %vm2112, %v2105, %v2109
  %v2114 = vand.u32 2147483647, %v1384
  %vm2115 = vcmp.eq.f32.partialorder %v2114, 8.507059e+37
  %v2116 = vand.u32 %v1384, 2147483648
  %v2117 = vor.u32 1.1754944e-38, %v2116
  %v2118 = vsel %vm2115, %v2117, %v2113
  %v2119 = vmul.f32 1.0, %v2118
  %v2120 = vrcp.pop %v1385
  %v2121 = vmul.f32 %v1385, %v2120
  %v2122 = vsub.f32 1.0, %v2121
  %v2123 = vmul.f32 %v2120, %v2122
  %v2124 = vadd.f32 %v2120, %v2123
  %vm2125 = vweird.f32 %v1385
  %vm2126 = vweird.f32 %v2120
  %vm2127 = vmor %vm2125, %vm2126
  %v2128 = vsel %vm2127, %v2120, %v2124
  %v2129 = vand.u32 2147483647, %v1385
  %vm2130 = vcmp.eq.f32.partialorder %v2129, 8.507059e+37
  %v2131 = vand.u32 %v1385, 2147483648
  %v2132 = vor.u32 1.1754944e-38, %v2131
  %v2133 = vsel %vm2130, %v2132, %v2128
  %v2134 = vmul.f32 1.0, %v2133
  %v2135 = vrcp.pop %v1386
  %v2136 = vmul.f32 %v1386, %v2135
  %v2137 = vsub.f32 1.0, %v2136
  %v2138 = vmul.f32 %v2135, %v2137
  %v2139 = vadd.f32 %v2135, %v2138
  %vm2140 = vweird.f32 %v1386
  %vm2141 = vweird.f32 %v2135
  %vm2142 = vmor %vm2140, %vm2141
  %v2143 = vsel %vm2142, %v2135, %v2139
  %v2144 = vand.u32 2147483647, %v1386
  %vm2145 = vcmp.eq.f32.partialorder %v2144, 8.507059e+37
  %v2146 = vand.u32 %v1386, 2147483648
  %v2147 = vor.u32 1.1754944e-38, %v2146
  %v2148 = vsel %vm2145, %v2147, %v2143
  %v2149 = vmul.f32 1.0, %v2148
  %v2150 = vrcp.pop %v1387
  %v2151 = vmul.f32 %v1387, %v2150
  %v2152 = vsub.f32 1.0, %v2151
  %v2153 = vmul.f32 %v2150, %v2152
  %v2154 = vadd.f32 %v2150, %v2153
  %vm2155 = vweird.f32 %v1387
  %vm2156 = vweird.f32 %v2150
  %vm2157 = vmor %vm2155, %vm2156
  %v2158 = vsel %vm2157, %v2150, %v2154
  %v2159 = vand.u32 2147483647, %v1387
  %vm2160 = vcmp.eq.f32.partialorder %v2159, 8.507059e+37
  %v2161 = vand.u32 %v1387, 2147483648
  %v2162 = vor.u32 1.1754944e-38, %v2161
  %v2163 = vsel %vm2160, %v2162, %v2158
  %v2164 = vmul.f32 1.0, %v2163
  %v2165 = vrcp.pop %v1388
  %v2166 = vmul.f32 %v1388, %v2165
  %v2167 = vsub.f32 1.0, %v2166
  %v2168 = vmul.f32 %v2165, %v2167
  %v2169 = vadd.f32 %v2165, %v2168
  %vm2170 = vweird.f32 %v1388
  %vm2171 = vweird.f32 %v2165
  %vm2172 = vmor %vm2170, %vm2171
  %v2173 = vsel %vm2172, %v2165, %v2169
  %v2174 = vand.u32 2147483647, %v1388
  %vm2175 = vcmp.eq.f32.partialorder %v2174, 8.507059e+37
  %v2176 = vand.u32 %v1388, 2147483648
  %v2177 = vor.u32 1.1754944e-38, %v2176
  %v2178 = vsel %vm2175, %v2177, %v2173
  %v2179 = vmul.f32 1.0, %v2178
  %v2180 = vrcp.pop %v1389
  %v2181 = vmul.f32 %v1389, %v2180
  %v2182 = vsub.f32 1.0, %v2181
  %v2183 = vmul.f32 %v2180, %v2182
  %v2184 = vadd.f32 %v2180, %v2183
  %vm2185 = vweird.f32 %v1389
  %vm2186 = vweird.f32 %v2180
  %vm2187 = vmor %vm2185, %vm2186
  %v2188 = vsel %vm2187, %v2180, %v2184
  %v2189 = vand.u32 2147483647, %v1389
  %vm2190 = vcmp.eq.f32.partialorder %v2189, 8.507059e+37
  %v2191 = vand.u32 %v1389, 2147483648
  %v2192 = vor.u32 1.1754944e-38, %v2191
  %v2193 = vsel %vm2190, %v2192, %v2188
  %v2194 = vmul.f32 1.0, %v2193
  %v2195 = vrcp.pop %v1390
  %v2196 = vmul.f32 %v1390, %v2195
  %v2197 = vsub.f32 1.0, %v2196
  %v2198 = vmul.f32 %v2195, %v2197
  %v2199 = vadd.f32 %v2195, %v2198
  %vm2200 = vweird.f32 %v1390
  %vm2201 = vweird.f32 %v2195
  %vm2202 = vmor %vm2200, %vm2201
  %v2203 = vsel %vm2202, %v2195, %v2199
  %v2204 = vand.u32 2147483647, %v1390
  %vm2205 = vcmp.eq.f32.partialorder %v2204, 8.507059e+37
  %v2206 = vand.u32 %v1390, 2147483648
  %v2207 = vor.u32 1.1754944e-38, %v2206
  %v2208 = vsel %vm2205, %v2207, %v2203
  %v2209 = vmul.f32 1.0, %v2208
  %v2210 = vrcp.pop %v1391
  %v2211 = vmul.f32 %v1391, %v2210
  %v2212 = vsub.f32 1.0, %v2211
  %v2213 = vmul.f32 %v2210, %v2212
  %v2214 = vadd.f32 %v2210, %v2213
  %vm2215 = vweird.f32 %v1391
  %vm2216 = vweird.f32 %v2210
  %vm2217 = vmor %vm2215, %vm2216
  %v2218 = vsel %vm2217, %v2210, %v2214
  %v2219 = vand.u32 2147483647, %v1391
  %vm2220 = vcmp.eq.f32.partialorder %v2219, 8.507059e+37
  %v2221 = vand.u32 %v1391, 2147483648
  %v2222 = vor.u32 1.1754944e-38, %v2221
  %v2223 = vsel %vm2220, %v2222, %v2218
  %v2224 = vmul.f32 1.0, %v2223
  %v2225 = vrcp.pop %v1392
  %v2226 = vmul.f32 %v1392, %v2225
  %v2227 = vsub.f32 1.0, %v2226
  %v2228 = vmul.f32 %v2225, %v2227
  %v2229 = vadd.f32 %v2225, %v2228
  %vm2230 = vweird.f32 %v1392
  %vm2231 = vweird.f32 %v2225
  %vm2232 = vmor %vm2230, %vm2231
  %v2233 = vsel %vm2232, %v2225, %v2229
  %v2234 = vand.u32 2147483647, %v1392
  %vm2235 = vcmp.eq.f32.partialorder %v2234, 8.507059e+37
  %v2236 = vand.u32 %v1392, 2147483648
  %v2237 = vor.u32 1.1754944e-38, %v2236
  %v2238 = vsel %vm2235, %v2237, %v2233
  %v2239 = vmul.f32 1.0, %v2238
  %v2240 = vrcp.pop %v1393
  %v2241 = vmul.f32 %v1393, %v2240
  %v2242 = vsub.f32 1.0, %v2241
  %v2243 = vmul.f32 %v2240, %v2242
  %v2244 = vadd.f32 %v2240, %v2243
  %vm2245 = vweird.f32 %v1393
  %vm2246 = vweird.f32 %v2240
  %vm2247 = vmor %vm2245, %vm2246
  %v2248 = vsel %vm2247, %v2240, %v2244
  %v2249 = vand.u32 2147483647, %v1393
  %vm2250 = vcmp.eq.f32.partialorder %v2249, 8.507059e+37
  %v2251 = vand.u32 %v1393, 2147483648
  %v2252 = vor.u32 1.1754944e-38, %v2251
  %v2253 = vsel %vm2250, %v2252, %v2248
  %v2254 = vmul.f32 1.0, %v2253
  %v2255 = vrcp.pop %v1394
  %v2256 = vmul.f32 %v1394, %v2255
  %v2257 = vsub.f32 1.0, %v2256
  %v2258 = vmul.f32 %v2255, %v2257
  %v2259 = vadd.f32 %v2255, %v2258
  %vm2260 = vweird.f32 %v1394
  %vm2261 = vweird.f32 %v2255
  %vm2262 = vmor %vm2260, %vm2261
  %v2263 = vsel %vm2262, %v2255, %v2259
  %v2264 = vand.u32 2147483647, %v1394
  %vm2265 = vcmp.eq.f32.partialorder %v2264, 8.507059e+37
  %v2266 = vand.u32 %v1394, 2147483648
  %v2267 = vor.u32 1.1754944e-38, %v2266
  %v2268 = vsel %vm2265, %v2267, %v2263
  %v2269 = vmul.f32 1.0, %v2268
  %v2270 = vrcp.pop %v1395
  %v2271 = vmul.f32 %v1395, %v2270
  %v2272 = vsub.f32 1.0, %v2271
  %v2273 = vmul.f32 %v2270, %v2272
  %v2274 = vadd.f32 %v2270, %v2273
  %vm2275 = vweird.f32 %v1395
  %vm2276 = vweird.f32 %v2270
  %vm2277 = vmor %vm2275, %vm2276
  %v2278 = vsel %vm2277, %v2270, %v2274
  %v2279 = vand.u32 2147483647, %v1395
  %vm2280 = vcmp.eq.f32.partialorder %v2279, 8.507059e+37
  %v2281 = vand.u32 %v1395, 2147483648
  %v2282 = vor.u32 1.1754944e-38, %v2281
  %v2283 = vsel %vm2280, %v2282, %v2278
  %v2284 = vmul.f32 1.0, %v2283
  %v2285 = vrcp.pop %v1396
  %v2286 = vmul.f32 %v1396, %v2285
  %v2287 = vsub.f32 1.0, %v2286
  %v2288 = vmul.f32 %v2285, %v2287
  %v2289 = vadd.f32 %v2285, %v2288
  %vm2290 = vweird.f32 %v1396
  %vm2291 = vweird.f32 %v2285
  %vm2292 = vmor %vm2290, %vm2291
  %v2293 = vsel %vm2292, %v2285, %v2289
  %v2294 = vand.u32 2147483647, %v1396
  %vm2295 = vcmp.eq.f32.partialorder %v2294, 8.507059e+37
  %v2296 = vand.u32 %v1396, 2147483648
  %v2297 = vor.u32 1.1754944e-38, %v2296
  %v2298 = vsel %vm2295, %v2297, %v2293
  %v2299 = vmul.f32 1.0, %v2298
  %v2300 = vrcp.pop %v1397
  %v2301 = vmul.f32 %v1397, %v2300
  %v2302 = vsub.f32 1.0, %v2301
  %v2303 = vmul.f32 %v2300, %v2302
  %v2304 = vadd.f32 %v2300, %v2303
  %vm2305 = vweird.f32 %v1397
  %vm2306 = vweird.f32 %v2300
  %vm2307 = vmor %vm2305, %vm2306
  %v2308 = vsel %vm2307, %v2300, %v2304
  %v2309 = vand.u32 2147483647, %v1397
  %vm2310 = vcmp.eq.f32.partialorder %v2309, 8.507059e+37
  %v2311 = vand.u32 %v1397, 2147483648
  %v2312 = vor.u32 1.1754944e-38, %v2311
  %v2313 = vsel %vm2310, %v2312, %v2308
  %v2314 = vmul.f32 1.0, %v2313
  %v2315 = vrcp.pop %v1398
  %v2316 = vmul.f32 %v1398, %v2315
  %v2317 = vsub.f32 1.0, %v2316
  %v2318 = vmul.f32 %v2315, %v2317
  %v2319 = vadd.f32 %v2315, %v2318
  %vm2320 = vweird.f32 %v1398
  %vm2321 = vweird.f32 %v2315
  %vm2322 = vmor %vm2320, %vm2321
  %v2323 = vsel %vm2322, %v2315, %v2319
  %v2324 = vand.u32 2147483647, %v1398
  %vm2325 = vcmp.eq.f32.partialorder %v2324, 8.507059e+37
  %v2326 = vand.u32 %v1398, 2147483648
  %v2327 = vor.u32 1.1754944e-38, %v2326
  %v2328 = vsel %vm2325, %v2327, %v2323
  %v2329 = vmul.f32 1.0, %v2328
  %v2330 = vrcp.pop %v1399
  %v2331 = vmul.f32 %v1399, %v2330
  %v2332 = vsub.f32 1.0, %v2331
  %v2333 = vmul.f32 %v2330, %v2332
  %v2334 = vadd.f32 %v2330, %v2333
  %vm2335 = vweird.f32 %v1399
  %vm2336 = vweird.f32 %v2330
  %vm2337 = vmor %vm2335, %vm2336
  %v2338 = vsel %vm2337, %v2330, %v2334
  %v2339 = vand.u32 2147483647, %v1399
  %vm2340 = vcmp.eq.f32.partialorder %v2339, 8.507059e+37
  %v2341 = vand.u32 %v1399, 2147483648
  %v2342 = vor.u32 1.1754944e-38, %v2341
  %v2343 = vsel %vm2340, %v2342, %v2338
  %v2344 = vmul.f32 1.0, %v2343
  %vm2345 = vcmask 31744
  %2346 = vst.msk [vmem:[%s8] sm:$0xff] %vm2345, %v1414
  %2347 = vst.msk [vmem:[%s8 + $0x8] sm:$0xff] %vm2345, %v1429
  %2348 = vst.msk [vmem:[%s8 + $0x10] sm:$0xff] %vm2345, %v1444
  %2349 = vst.msk [vmem:[%s8 + $0x18] sm:$0xff] %vm2345, %v1459
  %2350 = vst.msk [vmem:[%s8 + $0x20] sm:$0xff] %vm2345, %v1474
  %2351 = vst.msk [vmem:[%s8 + $0x28] sm:$0xff] %vm2345, %v1489
  %2352 = vst.msk [vmem:[%s8 + $0x30] sm:$0xff] %vm2345, %v1504
  %2353 = vst.msk [vmem:[%s8 + $0x38] sm:$0xff] %vm2345, %v1519
  %2354 = vst.msk [vmem:[%s8 + $0x40] sm:$0xff] %vm2345, %v1534
  %2355 = vst.msk [vmem:[%s8 + $0x48] sm:$0xff] %vm2345, %v1549
  %2356 = vst.msk [vmem:[%s8 + $0x50] sm:$0xff] %vm2345, %v1564
  %2357 = vst.msk [vmem:[%s8 + $0x58] sm:$0xff] %vm2345, %v1579
  %2358 = vst.msk [vmem:[%s8 + $0x60] sm:$0xff] %vm2345, %v1594
  %2359 = vst.msk [vmem:[%s8 + $0x68] sm:$0xff] %vm2345, %v1609
  %2360 = vst.msk [vmem:[%s8 + $0x70] sm:$0xff] %vm2345, %v1624
  %2361 = vst.msk [vmem:[%s8 + $0x78] sm:$0xff] %vm2345, %v1639
  %2362 = vst.msk [vmem:[%s8 + $0x80] sm:$0xff] %vm2345, %v1654
  %2363 = vst.msk [vmem:[%s8 + $0x88] sm:$0xff] %vm2345, %v1669
  %2364 = vst.msk [vmem:[%s8 + $0x90] sm:$0xff] %vm2345, %v1684
  %2365 = vst.msk [vmem:[%s8 + $0x98] sm:$0xff] %vm2345, %v1699
  %2366 = vst.msk [vmem:[%s8 + $0xa0] sm:$0xff] %vm2345, %v1714
  %2367 = vst.msk [vmem:[%s8 + $0xa8] sm:$0xff] %vm2345, %v1729
  %2368 = vst.msk [vmem:[%s8 + $0xb0] sm:$0xff] %vm2345, %v1744
  %2369 = vst.msk [vmem:[%s8 + $0xb8] sm:$0xff] %vm2345, %v1759
  %2370 = vst.msk [vmem:[%s8 + $0xc0] sm:$0xff] %vm2345, %v1774
  %2371 = vst.msk [vmem:[%s8 + $0xc8] sm:$0xff] %vm2345, %v1789
  %2372 = vst.msk [vmem:[%s8 + $0xd0] sm:$0xff] %vm2345, %v1804
  %2373 = vst.msk [vmem:[%s8 + $0xd8] sm:$0xff] %vm2345, %v1819
  %2374 = vst.msk [vmem:[%s8 + $0xe0] sm:$0xff] %vm2345, %v1834
  %2375 = vst.msk [vmem:[%s8 + $0xe8] sm:$0xff] %vm2345, %v1849
  %2376 = vst.msk [vmem:[%s8 + $0xf0] sm:$0xff] %vm2345, %v1864
  %2377 = vst.msk [vmem:[%s8 + $0xf8] sm:$0xff] %vm2345, %v1879
  %2378 = vst.msk [vmem:[%s8 + $0x100] sm:$0xff] %vm2345, %v1894
  %2379 = vst.msk [vmem:[%s8 + $0x108] sm:$0xff] %vm2345, %v1909
  %2380 = vst.msk [vmem:[%s8 + $0x110] sm:$0xff] %vm2345, %v1924
  %2381 = vst.msk [vmem:[%s8 + $0x118] sm:$0xff] %vm2345, %v1939
  %2382 = vst.msk [vmem:[%s8 + $0x120] sm:$0xff] %vm2345, %v1954
  %2383 = vst.msk [vmem:[%s8 + $0x128] sm:$0xff] %vm2345, %v1969
  %2384 = vst.msk [vmem:[%s8 + $0x130] sm:$0xff] %vm2345, %v1984
  %2385 = vst.msk [vmem:[%s8 + $0x138] sm:$0xff] %vm2345, %v1999
  %2386 = vst.msk [vmem:[%s8 + $0x140] sm:$0xff] %vm2345, %v2014
  %2387 = vst.msk [vmem:[%s8 + $0x148] sm:$0xff] %vm2345, %v2029
  %2388 = vst.msk [vmem:[%s8 + $0x150] sm:$0xff] %vm2345, %v2044
  %2389 = vst.msk [vmem:[%s8 + $0x158] sm:$0xff] %vm2345, %v2059
  %2390 = vst.msk [vmem:[%s8 + $0x160] sm:$0xff] %vm2345, %v2074
  %2391 = vst.msk [vmem:[%s8 + $0x168] sm:$0xff] %vm2345, %v2089
  %2392 = vst.msk [vmem:[%s8 + $0x170] sm:$0xff] %vm2345, %v2104
  %2393 = vst.msk [vmem:[%s8 + $0x178] sm:$0xff] %vm2345, %v2119
  %2394 = vst.msk [vmem:[%s8 + $0x180] sm:$0xff] %vm2345, %v2134
  %2395 = vst.msk [vmem:[%s8 + $0x188] sm:$0xff] %vm2345, %v2149
  %2396 = vst.msk [vmem:[%s8 + $0x190] sm:$0xff] %vm2345, %v2164
  %2397 = vst.msk [vmem:[%s8 + $0x198] sm:$0xff] %vm2345, %v2179
  %2398 = vst.msk [vmem:[%s8 + $0x1a0] sm:$0xff] %vm2345, %v2194
  %2399 = vst.msk [vmem:[%s8 + $0x1a8] sm:$0xff] %vm2345, %v2209
  %2400 = vst.msk [vmem:[%s8 + $0x1b0] sm:$0xff] %vm2345, %v2224
  %2401 = vst.msk [vmem:[%s8 + $0x1b8] sm:$0xff] %vm2345, %v2239
  %2402 = vst.msk [vmem:[%s8 + $0x1c0] sm:$0xff] %vm2345, %v2254
  %2403 = vst.msk [vmem:[%s8 + $0x1c8] sm:$0xff] %vm2345, %v2269
  %2404 = vst.msk [vmem:[%s8 + $0x1d0] sm:$0xff] %vm2345, %v2284
  %2405 = vst.msk [vmem:[%s8 + $0x1d8] sm:$0xff] %vm2345, %v2299
  %2406 = vst.msk [vmem:[%s8 + $0x1e0] sm:$0xff] %vm2345, %v2314
  %2407 = vst.msk [vmem:[%s8 + $0x1e8] sm:$0xff] %vm2345, %v2329
  %2408 = vst.msk [vmem:[%s8 + $0x1f0] sm:$0xff] %vm2345, %v2344
  // Predicated region
  $region34: #{link_predictor.1} parent=0 // pred_check
    _
  $region35: #{link_predictor.1} parent=0 // pred_check_branch
    %2410 = sbr.rel (0) target = $region37
  $region36: #{link_predictor.1} parent=0 // pred_region
    _
  $region37: #{link_predictor.1} parent=0 // pred_fallthru
    _
  // Predicated region
  $region38: #{link_predictor.1} parent=0 // pred_check
    _
  $region39: #{link_predictor.1} parent=0 // pred_check_branch
    %2412 = sbr.rel (0) target = $region41
  $region40: #{link_predictor.1} parent=0 // pred_region
    _
  $region41: #{link_predictor.1} parent=0 // pred_fallthru
    _

</llo_original>
